<compile_context>
chip_gen: v6e
topology: v6e:2x2x1
jax: 0.10.0
libtpu: 0.0.40
codegen_flags: <defaults>
</compile_context>

<pallas_src>
import functools

import jax
import jax.numpy as jnp
import numpy as np
from jax.experimental import pallas as pl
from jax.experimental.pallas import tpu as pltpu


# ----------------------------------------------------------------------------
# Packed-bias layout (shared by prepare_params and the kernel; all static ints).
# ----------------------------------------------------------------------------
def _bias_layout(H, M, Hc, C2):
    """(offset, width) per segment; every segment start is padded to a 128 lane
    multiple so in-kernel slices stay lane-aligned."""
    segs = [('bqc', H), ('bva', H), ('bq', H + M), ('bvn', M),
            ('bc1', Hc), ('bc2', C2), ('wal', H)]
    layout, off = {}, 0
    for name, w in segs:
        layout[name] = (off, w)
        off += ((w + 127) // 128) * 128
    return layout, off


def prepare_params(p, dtype=jnp.float32):
    """One-time parameter fusion/packing (run OUTSIDE the per-step jit).

    dtype: storage dtype for the 2-D matmul weights (use jnp.bfloat16 on
    v5e/v6e/v7x to halve HBM->VMEM traffic; biases stay f32)."""
    H = p['wva'].shape[1]
    M = p['wvn'].shape[1]
    Hc = p['wc1'].shape[1]
    C = p['wc2'].shape[1]
    C2 = ((C + 127) // 128) * 128          # lane-dense output stores

    wqc = jnp.concatenate([p['wqc_a'], p['wqc_p']], axis=0)          # (A+P, H)
    wq = jnp.concatenate([p['wqa'], p['wqn']], axis=1)               # (H, H+M)
    wc2, bc2 = p['wc2'], jnp.asarray(p['bc2']).reshape(1, -1)
    if C2 != C:
        wc2 = jnp.pad(wc2, ((0, 0), (0, C2 - C)))
        bc2 = jnp.pad(bc2, ((0, 0), (0, C2 - C)))

    layout, total = _bias_layout(H, M, Hc, C2)
    biases = jnp.zeros((1, total), jnp.float32)

    def put(buf, name, row):
        off, w = layout[name]
        return buf.at[:, off:off + w].set(
            jnp.asarray(row).reshape(1, -1).astype(jnp.float32))

    biases = put(biases, 'bqc', p['bqc'])
    biases = put(biases, 'bva', p['bva'])
    biases = put(biases, 'bq', jnp.concatenate(
        [jnp.asarray(p['bqa']).reshape(1, -1),
         jnp.asarray(p['bqn']).reshape(1, -1)], axis=-1))
    biases = put(biases, 'bvn', p['bvn'])
    biases = put(biases, 'bc1', p['bc1'])
    biases = put(biases, 'bc2', bc2)
    biases = put(biases, 'wal', p['wal'])
    # NOTE: p['bal'] (scalar attention-logit bias) is intentionally dropped:
    # softmax over the K regions is shift-invariant, so it cannot change the output.

    return {
        'wqc': wqc.astype(dtype), 'wva': p['wva'].astype(dtype),
        'wq': wq.astype(dtype), 'wvn': p['wvn'].astype(dtype),
        'wc1': p['wc1'].astype(dtype), 'wc2': wc2.astype(dtype),
        'biases': biases,
    }


# ----------------------------------------------------------------------------
# Kernel
# ----------------------------------------------------------------------------
def _top_down_kernel(cq_ref, img_ref, wqc_ref, wva_ref, wq_ref, wvn_ref,
                     wc1_ref, wc2_ref, biases_ref, out_ref):
    f32 = jnp.float32
    bb, K, V = img_ref.shape
    H = wva_ref.shape[1]
    M = wvn_ref.shape[1]
    Hc = wc1_ref.shape[1]
    C2 = wc2_ref.shape[1]
    layout, _ = _bias_layout(H, M, Hc, C2)

    def seg(name):                       # (1, w) f32 row from the packed bias array
        off, w = layout[name]
        return biases_ref[:, off:off + w]

    img = img_ref[...]                   # stored dtype (f32 or bf16) for MXU operands
    cq = cq_ref[...]

    # ---- query_composer: concat done outside -> one (bb, A+P)@(A+P, H) matmul
    q_emb = jax.nn.relu(
        jnp.dot(cq.astype(wqc_ref.dtype), wqc_ref[...], preferred_element_type=f32)
        + seg('bqc'))                                                   # (bb, H)

    # ---- v_att image projection: one flat 2-D MXU matmul
    v_proj = jax.nn.relu(
        jnp.dot(img.reshape(bb * K, V).astype(wva_ref.dtype), wva_ref[...],
                preferred_element_type=f32)
        + seg('bva'))                                                   # (bb*K, H)

    # ---- fused q_proj (attention) / q_repr (q_net): single matmul, slice result
    q_both = jax.nn.relu(
        jnp.dot(q_emb.astype(wq_ref.dtype), wq_ref[...], preferred_element_type=f32)
        + seg('bq'))                                                    # (bb, H+M)
    q_proj = q_both[:, :H]
    q_repr = q_both[:, H:]

    # ---- attention logits: wal folded into q_proj BEFORE the (bb,K,H) broadcast;
    #      the scalar logit bias is dropped (softmax shift-invariance).
    q_scaled = q_proj * seg('wal')                                      # (bb, H)
    att_logits = jnp.sum(v_proj.reshape(bb, K, H) * q_scaled[:, None, :], axis=-1)
    att_logits = att_logits - jnp.max(att_logits, axis=-1, keepdims=True)
    e = jnp.exp(att_logits)
    att = e * pl.reciprocal(jnp.sum(e, axis=-1, keepdims=True), approx=True)  # (bb, K)

    # ---- v_emb = (att * img).sum(1): multiply in the stored dtype (no f32 copy of
    #      the img tile), accumulate the K-reduction in f32.
    v_emb = jnp.sum(att.astype(img.dtype)[:, :, None] * img, axis=1,
                    dtype=f32)                                          # (bb, V)

    # ---- v_net
    v_repr = jax.nn.relu(
        jnp.dot(v_emb.astype(wvn_ref.dtype), wvn_ref[...], preferred_element_type=f32)
        + seg('bvn'))                                                   # (bb, M)

    # ---- MFB fusion.  Dropout_C is identity at eval; the view/sumpool/squeeze chain
    #      is a value no-op.  q_repr, v_repr >= 0 (ReLU outputs) so the negative
    #      sqrt branch is dead and sum(sign_sqrt^2) == sum(mfb).
    mfb = q_repr * v_repr
    sign_sqrt = jnp.sqrt(mfb)
    norm = jnp.sqrt(jnp.sum(mfb, axis=-1, keepdims=True))
    out = sign_sqrt * pl.reciprocal(jnp.maximum(norm, 1e-12), approx=True)

    # ---- classifier
    h = jax.nn.relu(
        jnp.dot(out.astype(wc1_ref.dtype), wc1_ref[...], preferred_element_type=f32)
        + seg('bc1'))
    logits = (jnp.dot(h.astype(wc2_ref.dtype), wc2_ref[...], preferred_element_type=f32)
              + seg('bc2'))
    out_ref[...] = logits.astype(out_ref.dtype)


# ----------------------------------------------------------------------------
# Tiling / VMEM heuristics
# ----------------------------------------------------------------------------
def _default_block_b(B, K, V, H, M, C2, in_itemsize, budget_bytes=24 << 20):
    """Largest 8-aligned batch tile whose f32 intermediates fit the VMEM budget
    (sized for the 32 MiB scoped default on v6e/v7x; v5e/v6e have more headroom)."""
    per_row = (2 * K * V * in_itemsize                     # double-buffered img tile
               + 4 * (2 * K * H                            # v_proj + (K,H) broadcast
                      + 2 * K * V                          # att*img work / f32 accum
                      + 3 * (H + M) + C2))                 # small row temporaries
    bb = (budget_bytes // max(per_row, 1)) // 8 * 8
    bb = int(min(max(bb, 8), 512, B))
    if bb >= B:
        return B
    while bb > 8 and B % bb:
        bb -= 8
    return bb if bb >= 8 and B % bb == 0 else B


def _vmem_limit_bytes(block_b, AP, K, V, H, M, Hc, C2, in_isz, w_isz, bias_cols):
    weights = (AP * H + V * H + H * (H + M) + V * M + M * Hc + Hc * C2) * w_isz
    tiles = 2 * block_b * (K * V + AP) * in_isz + 2 * block_b * C2 * 4
    interm = 4 * block_b * (2 * K * H + 2 * K * V + 3 * (H + M) + 2 * M + Hc + C2)
    est = 2 * weights + tiles + interm + 2 * bias_cols * 4
    return int(min(max(2 * est + (8 << 20), 16 << 20), 64 << 20))


# ----------------------------------------------------------------------------
# Wrapper
# ----------------------------------------------------------------------------
def top_down_baseline(img_grid_feat, agent_feat, place_feat, params, *,
                      num_classes=None, block_b=None):
    """Full forward pass in one Pallas kernel, tiled over batch.

    `params` is the fused dict from prepare_params().  block_b defaults to the
    largest 8-aligned tile fitting a conservative VMEM budget (whole batch for
    small B -> grid=(1,)).  On v7x, pass block_b = B // 2 only when B // 2 >= 8
    and divides B, so each TensorCore takes half the grid; for small B keep the
    whole batch in one grid step (splitting just duplicates weight staging).
    """
    B, K, V = img_grid_feat.shape
    cq = jnp.concatenate([agent_feat, place_feat], axis=-1)   # tiny one-time XLA op
    AP = cq.shape[-1]

    p = params
    H = p['wva'].shape[1]
    M = p['wvn'].shape[1]
    Hc = p['wc1'].shape[1]
    C2 = p['wc2'].shape[1]
    in_isz = jnp.dtype(img_grid_feat.dtype).itemsize
    w_isz = jnp.dtype(p['wva'].dtype).itemsize

    if block_b is None:
        block_b = _default_block_b(B, K, V, H, M, C2, in_isz)
    assert B % block_b == 0, "batch must divide the batch tile"
    assert block_b == B or block_b % 8 == 0, "batch tile must be 8-aligned"
    grid = (B // block_b,)
    # NOTE: K should be a multiple of 8 (pad image regions, e.g. 36 -> 40) so the
    # in-kernel (bb*K, V) / (bb, K, H) reshapes stay relayout-free views.

    def full(arr):  # whole-array (parameter) block; same block every grid step.
        # Weights are grid-invariant; if grid > 1 and weights are large, a
        # single-buffered pipeline_mode for these specs would halve their VMEM.
        zeros = (0,) * arr.ndim
        return pl.BlockSpec(arr.shape, lambda i, _z=zeros: _z)

    in_specs = [
        pl.BlockSpec((block_b, AP), lambda i: (i, 0)),        # concat query tile
        pl.BlockSpec((block_b, K, V), lambda i: (i, 0, 0)),   # img tile
        full(p['wqc']), full(p['wva']), full(p['wq']), full(p['wvn']),
        full(p['wc1']), full(p['wc2']), full(p['biases']),
    ]
    out_specs = pl.BlockSpec((block_b, C2), lambda i: (i, 0))

    out = pl.pallas_call(
        _top_down_kernel,
        out_shape=jax.ShapeDtypeStruct((B, C2), jnp.float32),
        grid=grid,
        in_specs=in_specs,
        out_specs=out_specs,
        compiler_params=pltpu.CompilerParams(
            dimension_semantics=("parallel",),
            vmem_limit_bytes=_vmem_limit_bytes(
                block_b, AP, K, V, H, M, Hc, C2, in_isz, w_isz,
                p['biases'].shape[1])),
    )(cq, img_grid_feat, p['wqc'], p['wva'], p['wq'], p['wvn'],
      p['wc1'], p['wc2'], p['biases'])

    if num_classes is not None and num_classes != C2:
        out = out[:, :num_classes]          # strip lane padding of the class dim
    return out


# ----------------------------------------------------------------------------
# Pure-JAX reference (mirrors the original PyTorch module, raw params)
# ----------------------------------------------------------------------------
def _reference(img, agent, place, p):
    cq = jnp.concatenate([agent, place], -1)
    wqc = jnp.concatenate([p['wqc_a'], p['wqc_p']], axis=0)
    q_emb = jax.nn.relu(cq @ wqc + p['bqc'])
    v_proj = jax.nn.relu(jnp.einsum('bkv,vh->bkh', img, p['wva']) + p['bva'][None])
    q_proj = jax.nn.relu(q_emb @ p['wqa'] + p['bqa'])
    joint = v_proj * q_proj[:, None, :]
    logits = jnp.sum(joint * p['wal'][None], -1) + p['bal'][0, 0]
    att = jax.nn.softmax(logits, axis=-1)
    v_emb = jnp.sum(att[:, :, None] * img, axis=1)
    v_repr = jax.nn.relu(v_emb @ p['wvn'] + p['bvn'])
    q_repr = jax.nn.relu(q_emb @ p['wqn'] + p['bqn'])
    mfb = q_repr * v_repr
    ss = jnp.sqrt(jax.nn.relu(mfb)) - jnp.sqrt(jax.nn.relu(-mfb))
    out = ss / jnp.maximum(jnp.linalg.norm(ss, axis=-1, keepdims=True), 1e-12)
    h = jax.nn.relu(out @ p['wc1'] + p['bc1'])
    return h @ p['wc2'] + p['bc2']


if __name__ == "__main__":
    # Small, TPU-friendly shapes implied by the forward pass.
    B, K, V = 8, 8, 128       # batch, image grid regions, image feature dim
    A, P = 64, 64             # agent / place feature dims
    H = 128                   # query / attention hidden dim
    M = 128                   # joint (MFB) dim
    C = 128                   # number of verb classes (lane-aligned here)

    key = jax.random.PRNGKey(0)
    ks = jax.random.split(key, 24)

    def w(k, shape, scale=0.05):
        return (scale * jax.random.normal(k, shape)).astype(jnp.float32)

    raw_params = {
        'wqc_a': w(ks[0], (A, H)), 'wqc_p': w(ks[19], (P, H)), 'bqc': w(ks[1], (1, H)),
        'wva': w(ks[2], (V, H)),   'bva': w(ks[3], (1, H)),
        'wqa': w(ks[4], (H, H)),   'bqa': w(ks[5], (1, H)),
        'wal': w(ks[6], (1, H)),   'bal': w(ks[7], (1, 1)),
        'wvn': w(ks[8], (V, M)),   'bvn': w(ks[9], (1, M)),
        'wqn': w(ks[10], (H, M)),  'bqn': w(ks[11], (1, M)),
        'wc1': w(ks[12], (M, 2 * M)), 'bc1': w(ks[13], (1, 2 * M)),
        'wc2': w(ks[14], (2 * M, C)), 'bc2': w(ks[15], (1, C)),
    }

    img_grid_feat = w(ks[16], (B, K, V), scale=1.0)
    agent_feat = w(ks[17], (B, A), scale=1.0)
    place_feat = w(ks[18], (B, P), scale=1.0)

    ref = _reference(img_grid_feat, agent_feat, place_feat, raw_params)

    fwd = jax.jit(functools.partial(top_down_baseline, num_classes=C))

    # --- f32 weights: tight check (tolerance covers the EUP approx reciprocal) ---
    params_f32 = prepare_params(raw_params, dtype=jnp.float32)
    logits = fwd(img_grid_feat, agent_feat, place_feat, params_f32)
    jax.block_until_ready(logits)
    np.testing.assert_allclose(np.asarray(logits), np.asarray(ref),
                               rtol=2e-3, atol=2e-3)
    assert logits.shape == (B, C)

    # --- bf16 weights + inputs (recommended on v5e/v6e/v7x): looser check -------
    params_bf16 = prepare_params(raw_params, dtype=jnp.bfloat16)
    logits_bf16 = fwd(img_grid_feat.astype(jnp.bfloat16),
                      agent_feat.astype(jnp.bfloat16),
                      place_feat.astype(jnp.bfloat16),
                      params_bf16)
    jax.block_until_ready(logits_bf16)
    np.testing.assert_allclose(np.asarray(logits_bf16), np.asarray(ref),
                               rtol=2e-2, atol=2e-2)

    print("KERNEL_OK")
</pallas_src>

<mosaic_0001>
module attributes {stable_mosaic.version = 11 : i64} {
  func.func @_top_down_kernel(%arg0: i32, %arg1: memref<8x128xf32, #tpu.memory_space<vmem>>, %arg2: memref<8x8x128xf32, #tpu.memory_space<vmem>>, %arg3: memref<128x128xf32, #tpu.memory_space<vmem>>, %arg4: memref<128x128xf32, #tpu.memory_space<vmem>>, %arg5: memref<128x256xf32, #tpu.memory_space<vmem>>, %arg6: memref<128x128xf32, #tpu.memory_space<vmem>>, %arg7: memref<128x256xf32, #tpu.memory_space<vmem>>, %arg8: memref<256x128xf32, #tpu.memory_space<vmem>>, %arg9: memref<1x1152xf32, #tpu.memory_space<vmem>>, %arg10: memref<8x128xf32, #tpu.memory_space<vmem>>) attributes {dimension_semantics = [#tpu.dimension_semantics<parallel>], iteration_bounds = array<i64: 1>, scalar_prefetch = 0 : i64, scratch_operands = 0 : i64, tpu.core_type = #tpu.core_type<tc>, window_params = [{transform_indices = @transform_0, window_bounds = array<i64: 8, 128>}, {transform_indices = @transform_1, window_bounds = array<i64: 8, 8, 128>}, {pipeline_mode = #tpu.pipeline_mode<synchronous>, transform_indices = @transform_2, window_bounds = array<i64: 128, 128>}, {pipeline_mode = #tpu.pipeline_mode<synchronous>, transform_indices = @transform_3, window_bounds = array<i64: 128, 128>}, {pipeline_mode = #tpu.pipeline_mode<synchronous>, transform_indices = @transform_4, window_bounds = array<i64: 128, 256>}, {pipeline_mode = #tpu.pipeline_mode<synchronous>, transform_indices = @transform_5, window_bounds = array<i64: 128, 128>}, {pipeline_mode = #tpu.pipeline_mode<synchronous>, transform_indices = @transform_6, window_bounds = array<i64: 128, 256>}, {pipeline_mode = #tpu.pipeline_mode<synchronous>, transform_indices = @transform_7, window_bounds = array<i64: 256, 128>}, {pipeline_mode = #tpu.pipeline_mode<synchronous>, transform_indices = @transform_8, window_bounds = array<i64: 1, 1152>}, {transform_indices = @transform_9, window_bounds = array<i64: 8, 128>}]} {
    %c0 = arith.constant 0 : index
    %c0_0 = arith.constant 0 : index
    %c0_1 = arith.constant 0 : index
    %0 = vector.load %arg2[%c0, %c0_0, %c0_1] : memref<8x8x128xf32, #tpu.memory_space<vmem>>, vector<8x8x128xf32>
    %c0_2 = arith.constant 0 : index
    %c0_3 = arith.constant 0 : index
    %1 = vector.load %arg1[%c0_2, %c0_3] : memref<8x128xf32, #tpu.memory_space<vmem>>, vector<8x128xf32>
    %c0_4 = arith.constant 0 : index
    %c0_5 = arith.constant 0 : index
    %2 = vector.load %arg3[%c0_4, %c0_5] : memref<128x128xf32, #tpu.memory_space<vmem>>, vector<128x128xf32>
    %cst = arith.constant dense<0.000000e+00> : vector<8x128xf32>
    %3 = tpu.matmul %1, %2, %cst {dimension_numbers = #tpu.dot_dimension_numbers<[1], [0], [0], [1], [0, 0, 1, 1], [], []>} : vector<8x128xf32>, vector<128x128xf32>, vector<8x128xf32> -> vector<8x128xf32>
    %c0_6 = arith.constant 0 : index
    %c0_7 = arith.constant 0 : index
    %4 = vector.load %arg9[%c0_6, %c0_7] : memref<1x1152xf32, #tpu.memory_space<vmem>>, vector<1x128xf32>
    %5 = vector.broadcast %4 : vector<1x128xf32> to vector<8x128xf32>
    %6 = arith.addf %3, %5 : vector<8x128xf32>
    %cst_8 = arith.constant 0.000000e+00 : f32
    %7 = vector.broadcast %cst_8 : f32 to vector<8x128xf32>
    %8 = arith.maximumf %6, %7 : vector<8x128xf32>
    %9 = vector.shape_cast %0 : vector<8x8x128xf32> to vector<64x128xf32>
    %c0_9 = arith.constant 0 : index
    %c0_10 = arith.constant 0 : index
    %10 = vector.load %arg4[%c0_9, %c0_10] : memref<128x128xf32, #tpu.memory_space<vmem>>, vector<128x128xf32>
    %cst_11 = arith.constant dense<0.000000e+00> : vector<64x128xf32>
    %11 = tpu.matmul %9, %10, %cst_11 {dimension_numbers = #tpu.dot_dimension_numbers<[1], [0], [0], [1], [0, 0, 1, 1], [], []>} : vector<64x128xf32>, vector<128x128xf32>, vector<64x128xf32> -> vector<64x128xf32>
    %c0_12 = arith.constant 0 : index
    %c128 = arith.constant 128 : index
    %12 = vector.load %arg9[%c0_12, %c128] : memref<1x1152xf32, #tpu.memory_space<vmem>>, vector<1x128xf32>
    %13 = vector.broadcast %12 : vector<1x128xf32> to vector<64x128xf32>
    %14 = arith.addf %11, %13 : vector<64x128xf32>
    %cst_13 = arith.constant 0.000000e+00 : f32
    %15 = vector.broadcast %cst_13 : f32 to vector<64x128xf32>
    %16 = arith.maximumf %14, %15 : vector<64x128xf32>
    %c0_14 = arith.constant 0 : index
    %c0_15 = arith.constant 0 : index
    %17 = vector.load %arg5[%c0_14, %c0_15] : memref<128x256xf32, #tpu.memory_space<vmem>>, vector<128x256xf32>
    %cst_16 = arith.constant dense<0.000000e+00> : vector<8x256xf32>
    %18 = tpu.matmul %8, %17, %cst_16 {dimension_numbers = #tpu.dot_dimension_numbers<[1], [0], [0], [1], [0, 0, 1, 1], [], []>} : vector<8x128xf32>, vector<128x256xf32>, vector<8x256xf32> -> vector<8x256xf32>
    %c0_17 = arith.constant 0 : index
    %c256 = arith.constant 256 : index
    %19 = vector.load %arg9[%c0_17, %c256] : memref<1x1152xf32, #tpu.memory_space<vmem>>, vector<1x256xf32>
    %20 = vector.broadcast %19 : vector<1x256xf32> to vector<8x256xf32>
    %21 = arith.addf %18, %20 : vector<8x256xf32>
    %cst_18 = arith.constant 0.000000e+00 : f32
    %22 = vector.broadcast %cst_18 : f32 to vector<8x256xf32>
    %23 = arith.maximumf %21, %22 : vector<8x256xf32>
    %24 = vector.extract_strided_slice %23 {offsets = [0, 0], sizes = [8, 128], strides = [1, 1]} : vector<8x256xf32> to vector<8x128xf32>
    %25 = vector.extract_strided_slice %23 {offsets = [0, 128], sizes = [8, 128], strides = [1, 1]} : vector<8x256xf32> to vector<8x128xf32>
    %c0_19 = arith.constant 0 : index
    %c1024 = arith.constant 1024 : index
    %26 = vector.load %arg9[%c0_19, %c1024] : memref<1x1152xf32, #tpu.memory_space<vmem>>, vector<1x128xf32>
    %27 = vector.broadcast %26 : vector<1x128xf32> to vector<8x128xf32>
    %28 = arith.mulf %24, %27 : vector<8x128xf32>
    %29 = vector.shape_cast %16 : vector<64x128xf32> to vector<8x8x128xf32>
    %30 = vector.shape_cast %28 : vector<8x128xf32> to vector<8x1x128xf32>
    %31 = vector.broadcast %30 : vector<8x1x128xf32> to vector<8x8x128xf32>
    %32 = arith.mulf %29, %31 : vector<8x8x128xf32>
    %cst_20 = arith.constant dense<0.000000e+00> : vector<8x8xf32>
    %33 = vector.multi_reduction <add>, %32, %cst_20 [2] : vector<8x8x128xf32> to vector<8x8xf32>
    %cst_21 = arith.constant dense<0xFF800000> : vector<8xf32>
    %34 = vector.multi_reduction <maximumf>, %33, %cst_21 [1] : vector<8x8xf32> to vector<8xf32>
    %35 = vector.shape_cast %34 : vector<8xf32> to vector<8x1xf32>
    %36 = vector.broadcast %35 : vector<8x1xf32> to vector<8x8xf32>
    %37 = arith.subf %33, %36 : vector<8x8xf32>
    %38 = math.exp %37 : vector<8x8xf32>
    %cst_22 = arith.constant dense<0.000000e+00> : vector<8xf32>
    %39 = vector.multi_reduction <add>, %38, %cst_22 [1] : vector<8x8xf32> to vector<8xf32>
    %40 = vector.shape_cast %39 : vector<8xf32> to vector<8x1xf32>
    %41 = tpu.reciprocal %40 {approx = true} : vector<8x1xf32> -> vector<8x1xf32>
    %42 = vector.broadcast %41 : vector<8x1xf32> to vector<8x8xf32>
    %43 = arith.mulf %38, %42 : vector<8x8xf32>
    %44 = vector.shape_cast %43 : vector<8x8xf32> to vector<8x8x1xf32>
    %45 = vector.broadcast %44 : vector<8x8x1xf32> to vector<8x8x128xf32>
    %46 = arith.mulf %45, %0 : vector<8x8x128xf32>
    %cst_23 = arith.constant dense<0.000000e+00> : vector<8x128xf32>
    %47 = vector.multi_reduction <add>, %46, %cst_23 [1] : vector<8x8x128xf32> to vector<8x128xf32>
    %c0_24 = arith.constant 0 : index
    %c0_25 = arith.constant 0 : index
    %48 = vector.load %arg6[%c0_24, %c0_25] : memref<128x128xf32, #tpu.memory_space<vmem>>, vector<128x128xf32>
    %cst_26 = arith.constant dense<0.000000e+00> : vector<8x128xf32>
    %49 = tpu.matmul %47, %48, %cst_26 {dimension_numbers = #tpu.dot_dimension_numbers<[1], [0], [0], [1], [0, 0, 1, 1], [], []>} : vector<8x128xf32>, vector<128x128xf32>, vector<8x128xf32> -> vector<8x128xf32>
    %c0_27 = arith.constant 0 : index
    %c512 = arith.constant 512 : index
    %50 = vector.load %arg9[%c0_27, %c512] : memref<1x1152xf32, #tpu.memory_space<vmem>>, vector<1x128xf32>
    %51 = vector.broadcast %50 : vector<1x128xf32> to vector<8x128xf32>
    %52 = arith.addf %49, %51 : vector<8x128xf32>
    %cst_28 = arith.constant 0.000000e+00 : f32
    %53 = vector.broadcast %cst_28 : f32 to vector<8x128xf32>
    %54 = arith.maximumf %52, %53 : vector<8x128xf32>
    %55 = arith.mulf %25, %54 : vector<8x128xf32>
    %56 = math.sqrt %55 : vector<8x128xf32>
    %cst_29 = arith.constant dense<0.000000e+00> : vector<8xf32>
    %57 = vector.multi_reduction <add>, %55, %cst_29 [1] : vector<8x128xf32> to vector<8xf32>
    %58 = vector.shape_cast %57 : vector<8xf32> to vector<8x1xf32>
    %59 = math.sqrt %58 : vector<8x1xf32>
    %cst_30 = arith.constant 9.99999996E-13 : f32
    %60 = vector.broadcast %cst_30 : f32 to vector<8x1xf32>
    %61 = arith.maximumf %59, %60 : vector<8x1xf32>
    %62 = tpu.reciprocal %61 {approx = true} : vector<8x1xf32> -> vector<8x1xf32>
    %63 = vector.broadcast %62 : vector<8x1xf32> to vector<8x128xf32>
    %64 = arith.mulf %56, %63 : vector<8x128xf32>
    %c0_31 = arith.constant 0 : index
    %c0_32 = arith.constant 0 : index
    %65 = vector.load %arg7[%c0_31, %c0_32] : memref<128x256xf32, #tpu.memory_space<vmem>>, vector<128x256xf32>
    %cst_33 = arith.constant dense<0.000000e+00> : vector<8x256xf32>
    %66 = tpu.matmul %64, %65, %cst_33 {dimension_numbers = #tpu.dot_dimension_numbers<[1], [0], [0], [1], [0, 0, 1, 1], [], []>} : vector<8x128xf32>, vector<128x256xf32>, vector<8x256xf32> -> vector<8x256xf32>
    %c0_34 = arith.constant 0 : index
    %c640 = arith.constant 640 : index
    %67 = vector.load %arg9[%c0_34, %c640] : memref<1x1152xf32, #tpu.memory_space<vmem>>, vector<1x256xf32>
    %68 = vector.broadcast %67 : vector<1x256xf32> to vector<8x256xf32>
    %69 = arith.addf %66, %68 : vector<8x256xf32>
    %cst_35 = arith.constant 0.000000e+00 : f32
    %70 = vector.broadcast %cst_35 : f32 to vector<8x256xf32>
    %71 = arith.maximumf %69, %70 : vector<8x256xf32>
    %c0_36 = arith.constant 0 : index
    %c0_37 = arith.constant 0 : index
    %72 = vector.load %arg8[%c0_36, %c0_37] : memref<256x128xf32, #tpu.memory_space<vmem>>, vector<256x128xf32>
    %cst_38 = arith.constant dense<0.000000e+00> : vector<8x128xf32>
    %73 = tpu.matmul %71, %72, %cst_38 {dimension_numbers = #tpu.dot_dimension_numbers<[1], [0], [0], [1], [0, 0, 1, 1], [], []>} : vector<8x256xf32>, vector<256x128xf32>, vector<8x128xf32> -> vector<8x128xf32>
    %c0_39 = arith.constant 0 : index
    %c896 = arith.constant 896 : index
    %74 = vector.load %arg9[%c0_39, %c896] : memref<1x1152xf32, #tpu.memory_space<vmem>>, vector<1x128xf32>
    %75 = vector.broadcast %74 : vector<1x128xf32> to vector<8x128xf32>
    %76 = arith.addf %73, %75 : vector<8x128xf32>
    %c0_40 = arith.constant 0 : index
    %c0_41 = arith.constant 0 : index
    %77 = vector.load %arg10[%c0_40, %c0_41] : memref<8x128xf32, #tpu.memory_space<vmem>>, vector<8x128xf32>
    tpu.vector_store %arg10[%c0_40, %c0_41], %76 {strides = array<i32>} : memref<8x128xf32, #tpu.memory_space<vmem>>, vector<8x128xf32>,
    return
  }
  func.func @transform_0(%arg0: i32) -> (i32, i32) {
    %c0_i32 = arith.constant 0 : i32
    %c0_i32_0 = arith.constant 0 : i32
    return %arg0, %c0_i32 : i32, i32
  }
  func.func @transform_1(%arg0: i32) -> (i32, i32, i32) {
    %c0_i32 = arith.constant 0 : i32
    %c0_i32_0 = arith.constant 0 : i32
    %c0_i32_1 = arith.constant 0 : i32
    return %arg0, %c0_i32, %c0_i32_0 : i32, i32, i32
  }
  func.func @transform_2(%arg0: i32) -> (i32, i32) {
    %c0_i32 = arith.constant 0 : i32
    %c0_i32_0 = arith.constant 0 : i32
    %c0_i32_1 = arith.constant 0 : i32
    return %c0_i32, %c0_i32_0 : i32, i32
  }
  func.func @transform_3(%arg0: i32) -> (i32, i32) {
    %c0_i32 = arith.constant 0 : i32
    %c0_i32_0 = arith.constant 0 : i32
    %c0_i32_1 = arith.constant 0 : i32
    return %c0_i32, %c0_i32_0 : i32, i32
  }
  func.func @transform_4(%arg0: i32) -> (i32, i32) {
    %c0_i32 = arith.constant 0 : i32
    %c0_i32_0 = arith.constant 0 : i32
    %c0_i32_1 = arith.constant 0 : i32
    return %c0_i32, %c0_i32_0 : i32, i32
  }
  func.func @transform_5(%arg0: i32) -> (i32, i32) {
    %c0_i32 = arith.constant 0 : i32
    %c0_i32_0 = arith.constant 0 : i32
    %c0_i32_1 = arith.constant 0 : i32
    return %c0_i32, %c0_i32_0 : i32, i32
  }
  func.func @transform_6(%arg0: i32) -> (i32, i32) {
    %c0_i32 = arith.constant 0 : i32
    %c0_i32_0 = arith.constant 0 : i32
    %c0_i32_1 = arith.constant 0 : i32
    return %c0_i32, %c0_i32_0 : i32, i32
  }
  func.func @transform_7(%arg0: i32) -> (i32, i32) {
    %c0_i32 = arith.constant 0 : i32
    %c0_i32_0 = arith.constant 0 : i32
    %c0_i32_1 = arith.constant 0 : i32
    return %c0_i32, %c0_i32_0 : i32, i32
  }
  func.func @transform_8(%arg0: i32) -> (i32, i32) {
    %c0_i32 = arith.constant 0 : i32
    %c0_i32_0 = arith.constant 0 : i32
    %c0_i32_1 = arith.constant 0 : i32
    return %c0_i32, %c0_i32_0 : i32, i32
  }
  func.func @transform_9(%arg0: i32) -> (i32, i32) {
    %c0_i32 = arith.constant 0 : i32
    %c0_i32_0 = arith.constant 0 : i32
    return %arg0, %c0_i32 : i32, i32
  }
}

</mosaic_0001>

<llo_original>
// kernel: top_down_baseline.1
$region0: #{top_down_baseline.1}
  #allocation0 [shape = 'u32[]', space=smem, size = 0x4, offset = 0x4, fixed_abs, tag = 'smem constant byte address 0x4 - core index']
  #allocation1 [shape = 'u32[144,128]{1,0:T(1,128)}', space=vmem, size = 0x12000, scoped, tag = 'internal scratch']
  %s0 = inlined_call_operand.vmem [shape: f32[8,128], index: 0, kind: input, shape index: {}]
  %s1 = inlined_call_operand.hbm [shape: f32[8,8,128], index: 1, kind: input, shape index: {}]
  %s2 = inlined_call_operand.hbm [shape: f32[128,128], index: 2, kind: input, shape index: {}]
  %s3 = inlined_call_operand.hbm [shape: f32[128,128], index: 3, kind: input, shape index: {}]
  %s4 = inlined_call_operand.hbm [shape: f32[128,256], index: 4, kind: input, shape index: {}]
  %s5 = inlined_call_operand.hbm [shape: f32[128,128], index: 5, kind: input, shape index: {}]
  %s6 = inlined_call_operand.hbm [shape: f32[128,256], index: 6, kind: input, shape index: {}]
  %s7 = inlined_call_operand.hbm [shape: f32[256,128], index: 7, kind: input, shape index: {}]
  %s8 = inlined_call_operand.vmem [shape: f32[1,1152], index: 8, kind: input, shape index: {}]
  %s9 = inlined_call_operand.hbm [shape: f32[8,128], index: 9, kind: output, shape index: {}]
  %s10 = sld [smem:[#allocation0]]
  $region74: #{top_down_baseline.1} parent=0
    _
  %s12 = ssub.s32 1, %s10
  %s13 = scalar_select 0, %s12, %s10
  $region1: #{top_down_baseline.1} parent=0
    #allocation2 [shape = 'u8[32768]{0}', space=vmem, size = 0x8000, scoped, tag = 'input window, operand 1, single buffered']
    #allocation3 [shape = 's32[1]{0}', space=sflag, size = 0x4, scoped, tag = 'scoped memory for top_down_baseline.1']
    #allocation4 [shape = 's32[1]{0}', space=sflag, size = 0x4, scoped, tag = 'scoped memory for top_down_baseline.1']
    #allocation5 [shape = 'u8[65536]{0}', space=vmem, size = 0x10000, scoped, tag = 'input window, operand 2, single buffered']
    #allocation6 [shape = 's32[1]{0}', space=sflag, size = 0x4, scoped, tag = 'scoped memory for top_down_baseline.1']
    #allocation7 [shape = 'u8[65536]{0}', space=vmem, size = 0x10000, scoped, tag = 'input window, operand 3, single buffered']
    #allocation8 [shape = 'u8[131072]{0}', space=vmem, size = 0x20000, scoped, tag = 'input window, operand 4, single buffered']
    #allocation9 [shape = 's32[1]{0}', space=sflag, size = 0x4, scoped, tag = 'scoped memory for top_down_baseline.1']
    #allocation10 [shape = 'u8[65536]{0}', space=vmem, size = 0x10000, scoped, tag = 'input window, operand 5, single buffered']
    #allocation11 [shape = 'u8[131072]{0}', space=vmem, size = 0x20000, scoped, tag = 'input window, operand 6, single buffered']
    #allocation12 [shape = 's32[1]{0}', space=sflag, size = 0x4, scoped, tag = 'scoped memory for top_down_baseline.1']
    #allocation13 [shape = 'u8[131072]{0}', space=vmem, size = 0x20000, scoped, tag = 'input window, operand 7, single buffered']
    #allocation14 [shape = 'u8[4096]{0}', space=vmem, size = 0x1000, scoped, tag = 'output window, operand 0, single buffered']
    %14 = vsyncpa [#allocation3], 0
    %15 = vsyncpa [#allocation6], 0
    %16 = vsyncpa [#allocation9], 0
    %17 = vsyncpa [#allocation12], 0
    %18 = vsyncpa [#allocation4], 0
    // Predicated region
    $region2: #{top_down_baseline.1} parent=1 // pred_check
      _
    $region3: #{top_down_baseline.1} parent=1 // pred_check_branch
      %20 = sbr.rel (0) target = $region5
    $region4: #{top_down_baseline.1} parent=1 // pred_region
      _
    $region5: #{top_down_baseline.1} parent=1 // pred_fallthru
      _
    // Predicated region
    $region6: #{top_down_baseline.1} parent=1 // pred_check
      _
    $region7: #{top_down_baseline.1} parent=1 // pred_check_branch
      %22 = sbr.rel (0) target = $region9
    $region8: #{top_down_baseline.1} parent=1 // pred_region
      %s24 = ssub.s32 1024, 1024
      %25 = vsyncadd [#allocation3], %s24
      %s26 = sshll.u32 [#allocation2], 4
      %s27 = int_to_ptr.vmem [resolvable:$true] %s26
      %32 = dma.hbm_to_vmem [thread:$0]  %s1, 1024, %s27, [#allocation3], 128, 128, 8
    $region9: #{top_down_baseline.1} parent=1 // pred_fallthru
      _
    // Predicated region
    $region10: #{top_down_baseline.1} parent=1 // pred_check
      _
    $region11: #{top_down_baseline.1} parent=1 // pred_check_branch
      %34 = sbr.rel (0) target = $region13
    $region12: #{top_down_baseline.1} parent=1 // pred_region
      %s36 = ssub.s32 2048, 2048
      %37 = vsyncadd [#allocation6], %s36
      %s38 = sshll.u32 [#allocation5], 4
      %s39 = int_to_ptr.vmem [resolvable:$true] %s38
      %44 = dma.hbm_to_vmem [thread:$0]  %s2, 2048, %s39, [#allocation6], 128, 128, 8
    $region13: #{top_down_baseline.1} parent=1 // pred_fallthru
      _
    // Predicated region
    $region14: #{top_down_baseline.1} parent=1 // pred_check
      _
    $region15: #{top_down_baseline.1} parent=1 // pred_check_branch
      %46 = sbr.rel (0) target = $region17
    $region16: #{top_down_baseline.1} parent=1 // pred_region
      %s48 = ssub.s32 2048, 2048
      %49 = vsyncadd [#allocation6], %s48
      %s50 = sshll.u32 [#allocation7], 4
      %s51 = int_to_ptr.vmem [resolvable:$true] %s50
      %56 = dma.hbm_to_vmem [thread:$0]  %s3, 2048, %s51, [#allocation6], 128, 128, 8
    $region17: #{top_down_baseline.1} parent=1 // pred_fallthru
      _
    // Predicated region
    $region18: #{top_down_baseline.1} parent=1 // pred_check
      _
    $region19: #{top_down_baseline.1} parent=1 // pred_check_branch
      %58 = sbr.rel (0) target = $region21
    $region20: #{top_down_baseline.1} parent=1 // pred_region
      %s60 = ssub.s32 4096, 4096
      %61 = vsyncadd [#allocation9], %s60
      %s62 = sshll.u32 [#allocation8], 4
      %s63 = int_to_ptr.vmem [resolvable:$true] %s62
      %68 = dma.hbm_to_vmem [thread:$0]  %s4, 4096, %s63, [#allocation9], 256, 256, 16
    $region21: #{top_down_baseline.1} parent=1 // pred_fallthru
      _
    // Predicated region
    $region22: #{top_down_baseline.1} parent=1 // pred_check
      _
    $region23: #{top_down_baseline.1} parent=1 // pred_check_branch
      %70 = sbr.rel (0) target = $region25
    $region24: #{top_down_baseline.1} parent=1 // pred_region
      %s72 = ssub.s32 2048, 2048
      %73 = vsyncadd [#allocation9], %s72
      %s74 = sshll.u32 [#allocation10], 4
      %s75 = int_to_ptr.vmem [resolvable:$true] %s74
      %80 = dma.hbm_to_vmem [thread:$0]  %s5, 2048, %s75, [#allocation9], 128, 128, 8
    $region25: #{top_down_baseline.1} parent=1 // pred_fallthru
      _
    // Predicated region
    $region26: #{top_down_baseline.1} parent=1 // pred_check
      _
    $region27: #{top_down_baseline.1} parent=1 // pred_check_branch
      %82 = sbr.rel (0) target = $region29
    $region28: #{top_down_baseline.1} parent=1 // pred_region
      %s84 = ssub.s32 4096, 4096
      %85 = vsyncadd [#allocation12], %s84
      %s86 = sshll.u32 [#allocation11], 4
      %s87 = int_to_ptr.vmem [resolvable:$true] %s86
      %92 = dma.hbm_to_vmem [thread:$0]  %s6, 4096, %s87, [#allocation12], 256, 256, 16
    $region29: #{top_down_baseline.1} parent=1 // pred_fallthru
      _
    // Predicated region
    $region30: #{top_down_baseline.1} parent=1 // pred_check
      _
    $region31: #{top_down_baseline.1} parent=1 // pred_check_branch
      %94 = sbr.rel (0) target = $region33
    $region32: #{top_down_baseline.1} parent=1 // pred_region
      %s96 = ssub.s32 4096, 4096
      %97 = vsyncadd [#allocation12], %s96
      %s98 = sshll.u32 [#allocation13], 4
      %s99 = int_to_ptr.vmem [resolvable:$true] %s98
      %104 = dma.hbm_to_vmem [thread:$0]  %s7, 4096, %s99, [#allocation12], 128, 128, 8
    $region33: #{top_down_baseline.1} parent=1 // pred_fallthru
      _
    // Predicated region
    $region34: #{top_down_baseline.1} parent=1 // pred_check
      _
    $region35: #{top_down_baseline.1} parent=1 // pred_check_branch
      %106 = sbr.rel (0) target = $region37
    $region36: #{top_down_baseline.1} parent=1 // pred_region
      _
    $region37: #{top_down_baseline.1} parent=1 // pred_fallthru
      _
    // Predicated region
    $region38: #{top_down_baseline.1} parent=1 // pred_check
      _
    $region39: #{top_down_baseline.1} parent=1 // pred_check_branch
      %108 = sbr.rel (0) target = $region41
    $region40: #{top_down_baseline.1} parent=1 // pred_region
      %109 = dma.done [#allocation3], 1024
    $region41: #{top_down_baseline.1} parent=1 // pred_fallthru
      _
    // Predicated region
    $region42: #{top_down_baseline.1} parent=1 // pred_check
      _
    $region43: #{top_down_baseline.1} parent=1 // pred_check_branch
      %111 = sbr.rel (0) target = $region45
    $region44: #{top_down_baseline.1} parent=1 // pred_region
      %112 = dma.done [#allocation6], 2048
    $region45: #{top_down_baseline.1} parent=1 // pred_fallthru
      _
    // Predicated region
    $region46: #{top_down_baseline.1} parent=1 // pred_check
      _
    $region47: #{top_down_baseline.1} parent=1 // pred_check_branch
      %114 = sbr.rel (0) target = $region49
    $region48: #{top_down_baseline.1} parent=1 // pred_region
      %115 = dma.done [#allocation6], 2048
    $region49: #{top_down_baseline.1} parent=1 // pred_fallthru
      _
    // Predicated region
    $region50: #{top_down_baseline.1} parent=1 // pred_check
      _
    $region51: #{top_down_baseline.1} parent=1 // pred_check_branch
      %117 = sbr.rel (0) target = $region53
    $region52: #{top_down_baseline.1} parent=1 // pred_region
      %118 = dma.done [#allocation9], 4096
    $region53: #{top_down_baseline.1} parent=1 // pred_fallthru
      _
    // Predicated region
    $region54: #{top_down_baseline.1} parent=1 // pred_check
      _
    $region55: #{top_down_baseline.1} parent=1 // pred_check_branch
      %120 = sbr.rel (0) target = $region57
    $region56: #{top_down_baseline.1} parent=1 // pred_region
      %121 = dma.done [#allocation9], 2048
    $region57: #{top_down_baseline.1} parent=1 // pred_fallthru
      _
    // Predicated region
    $region58: #{top_down_baseline.1} parent=1 // pred_check
      _
    $region59: #{top_down_baseline.1} parent=1 // pred_check_branch
      %123 = sbr.rel (0) target = $region61
    $region60: #{top_down_baseline.1} parent=1 // pred_region
      %124 = dma.done [#allocation12], 4096
    $region61: #{top_down_baseline.1} parent=1 // pred_fallthru
      _
    // Predicated region
    $region62: #{top_down_baseline.1} parent=1 // pred_check
      _
    $region63: #{top_down_baseline.1} parent=1 // pred_check_branch
      %126 = sbr.rel (0) target = $region65
    $region64: #{top_down_baseline.1} parent=1 // pred_region
      %127 = dma.done [#allocation12], 4096
    $region65: #{top_down_baseline.1} parent=1 // pred_fallthru
      _
    %v128 = vld [vmem:[#allocation2] sm:$0xff]
    %v129 = vld [vmem:[#allocation2 + $0x8] sm:$0xff]
    %v130 = vld [vmem:[#allocation2 + $0x10] sm:$0xff]
    %v131 = vld [vmem:[#allocation2 + $0x18] sm:$0xff]
    %v132 = vld [vmem:[#allocation2 + $0x20] sm:$0xff]
    %v133 = vld [vmem:[#allocation2 + $0x28] sm:$0xff]
    %v134 = vld [vmem:[#allocation2 + $0x30] sm:$0xff]
    %v135 = vld [vmem:[#allocation2 + $0x38] sm:$0xff]
    %v136 = vld [vmem:[%s0] sm:$0xff]
    %v137 = vld [vmem:[#allocation5] sm:$0xff]
    %v138 = vld [vmem:[#allocation5 + $0x8] sm:$0xff]
    %v139 = vld [vmem:[#allocation5 + $0x10] sm:$0xff]
    %v140 = vld [vmem:[#allocation5 + $0x18] sm:$0xff]
    %v141 = vld [vmem:[#allocation5 + $0x20] sm:$0xff]
    %v142 = vld [vmem:[#allocation5 + $0x28] sm:$0xff]
    %v143 = vld [vmem:[#allocation5 + $0x30] sm:$0xff]
    %v144 = vld [vmem:[#allocation5 + $0x38] sm:$0xff]
    %v145 = vld [vmem:[#allocation5 + $0x40] sm:$0xff]
    %v146 = vld [vmem:[#allocation5 + $0x48] sm:$0xff]
    %v147 = vld [vmem:[#allocation5 + $0x50] sm:$0xff]
    %v148 = vld [vmem:[#allocation5 + $0x58] sm:$0xff]
    %v149 = vld [vmem:[#allocation5 + $0x60] sm:$0xff]
    %v150 = vld [vmem:[#allocation5 + $0x68] sm:$0xff]
    %v151 = vld [vmem:[#allocation5 + $0x70] sm:$0xff]
    %v152 = vld [vmem:[#allocation5 + $0x78] sm:$0xff]
    %v153 = vld [vmem:[%s8] sm:$0x1]
    %v155 = vlaneseq
    %v156 = vshrl.u32 %v155, 7
    %v157 = vsub.s32 0, %v156
    %v158 = vrot.slane %v153, %v157
    %160 = vmatprep.subr.mxu0 0.0
    %161 = vmatpush1.msra.mxu0 %v152
    %162 = vmatprep.subr.mxu0 0.0
    %163 = vmatpush1.msra.mxu0 %v151
    %164 = vmatprep.subr.mxu0 0.0
    %165 = vmatpush1.msra.mxu0 %v150
    %166 = vmatprep.subr.mxu0 0.0
    %167 = vmatpush1.msra.mxu0 %v149
    %168 = vmatprep.subr.mxu0 0.0
    %169 = vmatpush1.msra.mxu0 %v148
    %170 = vmatprep.subr.mxu0 0.0
    %171 = vmatpush1.msra.mxu0 %v147
    %172 = vmatprep.subr.mxu0 0.0
    %173 = vmatpush1.msra.mxu0 %v146
    %174 = vmatprep.subr.mxu0 0.0
    %175 = vmatpush1.msra.mxu0 %v145
    %176 = vmatprep.subr.mxu0 0.0
    %177 = vmatpush1.msra.mxu0 %v144
    %178 = vmatprep.subr.mxu0 0.0
    %179 = vmatpush1.msra.mxu0 %v143
    %180 = vmatprep.subr.mxu0 0.0
    %181 = vmatpush1.msra.mxu0 %v142
    %182 = vmatprep.subr.mxu0 0.0
    %183 = vmatpush1.msra.mxu0 %v141
    %184 = vmatprep.subr.mxu0 0.0
    %185 = vmatpush1.msra.mxu0 %v140
    %186 = vmatprep.subr.mxu0 0.0
    %187 = vmatpush1.msra.mxu0 %v139
    %188 = vmatprep.subr.mxu0 0.0
    %189 = vmatpush1.msra.mxu0 %v138
    %190 = vmatprep.subr.mxu0 0.0
    %191 = vmatpush1.msra.mxu0 %v137
    %192 = vmatprep.subr.mxu0 0.0
    %193 = vmatpush2.msra.mxu0 0.0
    %194 = vmatprep.subr.mxu0 0.0
    %195 = vmatpush2.msra.mxu0 0.0
    %196 = vmatprep.subr.mxu0 0.0
    %197 = vmatpush2.msra.mxu0 0.0
    %198 = vmatprep.subr.mxu0 0.0
    %199 = vmatpush2.msra.mxu0 0.0
    %200 = vmatprep.subr.mxu0 0.0
    %201 = vmatpush2.msra.mxu0 0.0
    %202 = vmatprep.subr.mxu0 0.0
    %203 = vmatpush2.msra.mxu0 0.0
    %204 = vmatprep.subr.mxu0 0.0
    %205 = vmatpush2.msra.mxu0 0.0
    %206 = vmatprep.subr.mxu0 0.0
    %207 = vmatpush2.msra.mxu0 0.0
    %208 = vmatprep.subr.mxu0 0.0
    %209 = vmatpush2.msra.mxu0 0.0
    %210 = vmatprep.subr.mxu0 0.0
    %211 = vmatpush2.msra.mxu0 0.0
    %212 = vmatprep.subr.mxu0 0.0
    %213 = vmatpush2.msra.mxu0 0.0
    %214 = vmatprep.subr.mxu0 0.0
    %215 = vmatpush2.msra.mxu0 0.0
    %216 = vmatprep.subr.mxu0 0.0
    %217 = vmatpush2.msra.mxu0 0.0
    %218 = vmatprep.subr.mxu0 0.0
    %219 = vmatpush2.msra.mxu0 0.0
    %220 = vmatprep.subr.mxu0 0.0
    %221 = vmatpush2.msra.mxu0 0.0
    %222 = vmatprep.subr.mxu0 0.0
    %223 = vmatpush2.msra.mxu0 0.0
    %224 = vmatprep.mubr.f32.mxu0 0.0
    %225 = vmatmul.mubr.f32.gmra.mxu0 %v136
    %v226 = vpop.f32.mrf.mxu0
    %v227 = vadd.f32 %v158, %v226
    %v228 = vpop.f32.mrf.mxu0
    %229 = vdwg.mxu0
    %v230 = vmax.f32 %v227, 0.0
    %v231 = vld [vmem:[#allocation7] sm:$0xff]
    %v232 = vld [vmem:[#allocation7 + $0x8] sm:$0xff]
    %v233 = vld [vmem:[#allocation7 + $0x10] sm:$0xff]
    %v234 = vld [vmem:[#allocation7 + $0x18] sm:$0xff]
    %v235 = vld [vmem:[#allocation7 + $0x20] sm:$0xff]
    %v236 = vld [vmem:[#allocation7 + $0x28] sm:$0xff]
    %v237 = vld [vmem:[#allocation7 + $0x30] sm:$0xff]
    %v238 = vld [vmem:[#allocation7 + $0x38] sm:$0xff]
    %v239 = vld [vmem:[#allocation7 + $0x40] sm:$0xff]
    %v240 = vld [vmem:[#allocation7 + $0x48] sm:$0xff]
    %v241 = vld [vmem:[#allocation7 + $0x50] sm:$0xff]
    %v242 = vld [vmem:[#allocation7 + $0x58] sm:$0xff]
    %v243 = vld [vmem:[#allocation7 + $0x60] sm:$0xff]
    %v244 = vld [vmem:[#allocation7 + $0x68] sm:$0xff]
    %v245 = vld [vmem:[#allocation7 + $0x70] sm:$0xff]
    %v246 = vld [vmem:[#allocation7 + $0x78] sm:$0xff]
    %v247 = vld [vmem:[%s8 + $0x1] sm:$0x1]
    %v249 = vlaneseq
    %v250 = vshrl.u32 %v249, 7
    %v251 = vsub.s32 0, %v250
    %v252 = vrot.slane %v247, %v251
    %254 = vmatprep.subr.mxu0 0.0
    %255 = vmatpush1.msra.mxu0 %v246
    %256 = vmatprep.subr.mxu0 0.0
    %257 = vmatpush1.msra.mxu0 %v245
    %258 = vmatprep.subr.mxu0 0.0
    %259 = vmatpush1.msra.mxu0 %v244
    %260 = vmatprep.subr.mxu0 0.0
    %261 = vmatpush1.msra.mxu0 %v243
    %262 = vmatprep.subr.mxu0 0.0
    %263 = vmatpush1.msra.mxu0 %v242
    %264 = vmatprep.subr.mxu0 0.0
    %265 = vmatpush1.msra.mxu0 %v241
    %266 = vmatprep.subr.mxu0 0.0
    %267 = vmatpush1.msra.mxu0 %v240
    %268 = vmatprep.subr.mxu0 0.0
    %269 = vmatpush1.msra.mxu0 %v239
    %270 = vmatprep.subr.mxu0 0.0
    %271 = vmatpush1.msra.mxu0 %v238
    %272 = vmatprep.subr.mxu0 0.0
    %273 = vmatpush1.msra.mxu0 %v237
    %274 = vmatprep.subr.mxu0 0.0
    %275 = vmatpush1.msra.mxu0 %v236
    %276 = vmatprep.subr.mxu0 0.0
    %277 = vmatpush1.msra.mxu0 %v235
    %278 = vmatprep.subr.mxu0 0.0
    %279 = vmatpush1.msra.mxu0 %v234
    %280 = vmatprep.subr.mxu0 0.0
    %281 = vmatpush1.msra.mxu0 %v233
    %282 = vmatprep.subr.mxu0 0.0
    %283 = vmatpush1.msra.mxu0 %v232
    %284 = vmatprep.subr.mxu0 0.0
    %285 = vmatpush1.msra.mxu0 %v231
    %286 = vmatprep.subr.mxu0 0.0
    %287 = vmatpush2.msra.mxu0 0.0
    %288 = vmatprep.subr.mxu0 0.0
    %289 = vmatpush2.msra.mxu0 0.0
    %290 = vmatprep.subr.mxu0 0.0
    %291 = vmatpush2.msra.mxu0 0.0
    %292 = vmatprep.subr.mxu0 0.0
    %293 = vmatpush2.msra.mxu0 0.0
    %294 = vmatprep.subr.mxu0 0.0
    %295 = vmatpush2.msra.mxu0 0.0
    %296 = vmatprep.subr.mxu0 0.0
    %297 = vmatpush2.msra.mxu0 0.0
    %298 = vmatprep.subr.mxu0 0.0
    %299 = vmatpush2.msra.mxu0 0.0
    %300 = vmatprep.subr.mxu0 0.0
    %301 = vmatpush2.msra.mxu0 0.0
    %302 = vmatprep.subr.mxu0 0.0
    %303 = vmatpush2.msra.mxu0 0.0
    %304 = vmatprep.subr.mxu0 0.0
    %305 = vmatpush2.msra.mxu0 0.0
    %306 = vmatprep.subr.mxu0 0.0
    %307 = vmatpush2.msra.mxu0 0.0
    %308 = vmatprep.subr.mxu0 0.0
    %309 = vmatpush2.msra.mxu0 0.0
    %310 = vmatprep.subr.mxu0 0.0
    %311 = vmatpush2.msra.mxu0 0.0
    %312 = vmatprep.subr.mxu0 0.0
    %313 = vmatpush2.msra.mxu0 0.0
    %314 = vmatprep.subr.mxu0 0.0
    %315 = vmatpush2.msra.mxu0 0.0
    %316 = vmatprep.subr.mxu0 0.0
    %317 = vmatpush2.msra.mxu0 0.0
    %318 = vmatprep.mubr.f32.mxu0 0.0
    %319 = vmatmul.mubr.f32.gmra.mxu0 %v128
    %v320 = vpop.f32.mrf.mxu0
    %v321 = vadd.f32 %v252, %v320
    %v322 = vpop.f32.mrf.mxu0
    %323 = vmatprep.mubr.f32.mxu0 0.0
    %324 = vmatmul.mubr.f32.gmra.mxu0 %v129
    %v325 = vpop.f32.mrf.mxu0
    %v326 = vadd.f32 %v252, %v325
    %v327 = vpop.f32.mrf.mxu0
    %328 = vmatprep.mubr.f32.mxu0 0.0
    %329 = vmatmul.mubr.f32.gmra.mxu0 %v130
    %v330 = vpop.f32.mrf.mxu0
    %v331 = vadd.f32 %v252, %v330
    %v332 = vpop.f32.mrf.mxu0
    %333 = vmatprep.mubr.f32.mxu0 0.0
    %334 = vmatmul.mubr.f32.gmra.mxu0 %v131
    %v335 = vpop.f32.mrf.mxu0
    %v336 = vadd.f32 %v252, %v335
    %v337 = vpop.f32.mrf.mxu0
    %338 = vmatprep.mubr.f32.mxu0 0.0
    %339 = vmatmul.mubr.f32.gmra.mxu0 %v132
    %v340 = vpop.f32.mrf.mxu0
    %v341 = vadd.f32 %v252, %v340
    %v342 = vpop.f32.mrf.mxu0
    %343 = vmatprep.mubr.f32.mxu0 0.0
    %344 = vmatmul.mubr.f32.gmra.mxu0 %v133
    %v345 = vpop.f32.mrf.mxu0
    %v346 = vadd.f32 %v252, %v345
    %v347 = vpop.f32.mrf.mxu0
    %348 = vmatprep.mubr.f32.mxu0 0.0
    %349 = vmatmul.mubr.f32.gmra.mxu0 %v134
    %v350 = vpop.f32.mrf.mxu0
    %v351 = vadd.f32 %v252, %v350
    %v352 = vpop.f32.mrf.mxu0
    %353 = vmatprep.mubr.f32.mxu0 0.0
    %354 = vmatmul.mubr.f32.gmra.mxu0 %v135
    %v355 = vpop.f32.mrf.mxu0
    %v356 = vadd.f32 %v252, %v355
    %v357 = vpop.f32.mrf.mxu0
    %358 = vdwg.mxu0
    %v359 = vmax.f32 %v321, 0.0
    %v360 = vmax.f32 %v326, 0.0
    %v361 = vmax.f32 %v331, 0.0
    %v362 = vmax.f32 %v336, 0.0
    %v363 = vmax.f32 %v341, 0.0
    %v364 = vmax.f32 %v346, 0.0
    %v365 = vmax.f32 %v351, 0.0
    %v366 = vmax.f32 %v356, 0.0
    %v367 = vld [vmem:[#allocation8] sm:$0xff]
    %v368 = vld [vmem:[#allocation8 + $0x8] sm:$0xff]
    %v369 = vld [vmem:[#allocation8 + $0x10] sm:$0xff]
    %v370 = vld [vmem:[#allocation8 + $0x18] sm:$0xff]
    %v371 = vld [vmem:[#allocation8 + $0x20] sm:$0xff]
    %v372 = vld [vmem:[#allocation8 + $0x28] sm:$0xff]
    %v373 = vld [vmem:[#allocation8 + $0x30] sm:$0xff]
    %v374 = vld [vmem:[#allocation8 + $0x38] sm:$0xff]
    %v375 = vld [vmem:[#allocation8 + $0x40] sm:$0xff]
    %v376 = vld [vmem:[#allocation8 + $0x48] sm:$0xff]
    %v377 = vld [vmem:[#allocation8 + $0x50] sm:$0xff]
    %v378 = vld [vmem:[#allocation8 + $0x58] sm:$0xff]
    %v379 = vld [vmem:[#allocation8 + $0x60] sm:$0xff]
    %v380 = vld [vmem:[#allocation8 + $0x68] sm:$0xff]
    %v381 = vld [vmem:[#allocation8 + $0x70] sm:$0xff]
    %v382 = vld [vmem:[#allocation8 + $0x78] sm:$0xff]
    %v383 = vld [vmem:[#allocation8 + $0x80] sm:$0xff]
    %v384 = vld [vmem:[#allocation8 + $0x88] sm:$0xff]
    %v385 = vld [vmem:[#allocation8 + $0x90] sm:$0xff]
    %v386 = vld [vmem:[#allocation8 + $0x98] sm:$0xff]
    %v387 = vld [vmem:[#allocation8 + $0xa0] sm:$0xff]
    %v388 = vld [vmem:[#allocation8 + $0xa8] sm:$0xff]
    %v389 = vld [vmem:[#allocation8 + $0xb0] sm:$0xff]
    %v390 = vld [vmem:[#allocation8 + $0xb8] sm:$0xff]
    %v391 = vld [vmem:[#allocation8 + $0xc0] sm:$0xff]
    %v392 = vld [vmem:[#allocation8 + $0xc8] sm:$0xff]
    %v393 = vld [vmem:[#allocation8 + $0xd0] sm:$0xff]
    %v394 = vld [vmem:[#allocation8 + $0xd8] sm:$0xff]
    %v395 = vld [vmem:[#allocation8 + $0xe0] sm:$0xff]
    %v396 = vld [vmem:[#allocation8 + $0xe8] sm:$0xff]
    %v397 = vld [vmem:[#allocation8 + $0xf0] sm:$0xff]
    %v398 = vld [vmem:[#allocation8 + $0xf8] sm:$0xff]
    %v399 = vld [vmem:[%s8 + $0x2] sm:$0x3]
    %v401 = vlaneseq
    %v402 = vshrl.u32 %v401, 7
    %v403 = vsub.s32 0, %v402
    %v404 = vrot.slane %v399, %v403
    %v405 = vlaneseq
    %v406 = vshrl.u32 %v405, 7
    %v407 = vsub.s32 1, %v406
    %v408 = vrot.slane %v399, %v407
    %411 = vmatprep.subr.mxu0 %v398
    %412 = vmatpush1.msra.mxu0 %v397
    %413 = vmatprep.subr.mxu0 %v396
    %414 = vmatpush1.msra.mxu0 %v395
    %415 = vmatprep.subr.mxu0 %v394
    %416 = vmatpush1.msra.mxu0 %v393
    %417 = vmatprep.subr.mxu0 %v392
    %418 = vmatpush1.msra.mxu0 %v391
    %419 = vmatprep.subr.mxu0 %v390
    %420 = vmatpush1.msra.mxu0 %v389
    %421 = vmatprep.subr.mxu0 %v388
    %422 = vmatpush1.msra.mxu0 %v387
    %423 = vmatprep.subr.mxu0 %v386
    %424 = vmatpush1.msra.mxu0 %v385
    %425 = vmatprep.subr.mxu0 %v384
    %426 = vmatpush1.msra.mxu0 %v383
    %427 = vmatprep.subr.mxu0 %v382
    %428 = vmatpush1.msra.mxu0 %v381
    %429 = vmatprep.subr.mxu0 %v380
    %430 = vmatpush1.msra.mxu0 %v379
    %431 = vmatprep.subr.mxu0 %v378
    %432 = vmatpush1.msra.mxu0 %v377
    %433 = vmatprep.subr.mxu0 %v376
    %434 = vmatpush1.msra.mxu0 %v375
    %435 = vmatprep.subr.mxu0 %v374
    %436 = vmatpush1.msra.mxu0 %v373
    %437 = vmatprep.subr.mxu0 %v372
    %438 = vmatpush1.msra.mxu0 %v371
    %439 = vmatprep.subr.mxu0 %v370
    %440 = vmatpush1.msra.mxu0 %v369
    %441 = vmatprep.subr.mxu0 %v368
    %442 = vmatpush1.msra.mxu0 %v367
    %443 = vmatprep.subr.mxu0 0.0
    %444 = vmatpush2.msra.mxu0 0.0
    %445 = vmatprep.subr.mxu0 0.0
    %446 = vmatpush2.msra.mxu0 0.0
    %447 = vmatprep.subr.mxu0 0.0
    %448 = vmatpush2.msra.mxu0 0.0
    %449 = vmatprep.subr.mxu0 0.0
    %450 = vmatpush2.msra.mxu0 0.0
    %451 = vmatprep.subr.mxu0 0.0
    %452 = vmatpush2.msra.mxu0 0.0
    %453 = vmatprep.subr.mxu0 0.0
    %454 = vmatpush2.msra.mxu0 0.0
    %455 = vmatprep.subr.mxu0 0.0
    %456 = vmatpush2.msra.mxu0 0.0
    %457 = vmatprep.subr.mxu0 0.0
    %458 = vmatpush2.msra.mxu0 0.0
    %459 = vmatprep.subr.mxu0 0.0
    %460 = vmatpush2.msra.mxu0 0.0
    %461 = vmatprep.subr.mxu0 0.0
    %462 = vmatpush2.msra.mxu0 0.0
    %463 = vmatprep.subr.mxu0 0.0
    %464 = vmatpush2.msra.mxu0 0.0
    %465 = vmatprep.subr.mxu0 0.0
    %466 = vmatpush2.msra.mxu0 0.0
    %467 = vmatprep.subr.mxu0 0.0
    %468 = vmatpush2.msra.mxu0 0.0
    %469 = vmatprep.subr.mxu0 0.0
    %470 = vmatpush2.msra.mxu0 0.0
    %471 = vmatprep.subr.mxu0 0.0
    %472 = vmatpush2.msra.mxu0 0.0
    %473 = vmatprep.subr.mxu0 0.0
    %474 = vmatpush2.msra.mxu0 0.0
    %475 = vmatprep.mubr.f32.mxu0 0.0
    %476 = vmatmul.mubr.f32.gmra.mxu0 %v230
    %v477 = vpop.f32.mrf.mxu0
    %v478 = vadd.f32 %v404, %v477
    %v479 = vpop.f32.mrf.mxu0
    %v480 = vadd.f32 %v408, %v479
    %481 = vdwg.mxu0
    %v482 = vmax.f32 %v478, 0.0
    %v483 = vmax.f32 %v480, 0.0
    %v484 = vld [vmem:[%s8 + $0x8] sm:$0x1]
    %v486 = vlaneseq
    %v487 = vshrl.u32 %v486, 7
    %v488 = vsub.s32 0, %v487
    %v489 = vrot.slane %v484, %v488
    %v491 = vmul.f32 %v482, %v489
    %v493 = vcombine.high %v491, %v491
    %v495 = vunpack.c.l.s4 1966171168
    %v496 = vunpack.c.0.s8 %v495
    %v497 = vlaneseq
    %v498 = vshrl.u32 %v497, 7
    %v499 = vsub.s32 %v496, %v498
    %v500 = vrot.slane %v491, %v499
    %v502 = vunpack.c.l.s4 1966171168
    %v503 = vunpack.c.0.s8 %v502
    %v504 = vlaneseq
    %v505 = vshrl.u32 %v504, 7
    %v506 = vsub.s32 %v503, %v505
    %v507 = vrot.slane %v493, %v506
    %v508 = vcombine.high %v500, %v500
    %v509 = vcombine.high %v507, %v507
    %v511 = vunpack.c.l.s4 1966171168
    %v512 = vunpack.c.0.s8 %v511
    %v513 = vlaneseq
    %v514 = vshrl.u32 %v513, 7
    %v515 = vsub.s32 %v512, %v514
    %v516 = vrot.slane %v500, %v515
    %v518 = vunpack.c.l.s4 1966171168
    %v519 = vunpack.c.0.s8 %v518
    %v520 = vlaneseq
    %v521 = vshrl.u32 %v520, 7
    %v522 = vsub.s32 %v519, %v521
    %v523 = vrot.slane %v507, %v522
    %v525 = vunpack.c.l.s4 1966171168
    %v526 = vunpack.c.0.s8 %v525
    %v527 = vlaneseq
    %v528 = vshrl.u32 %v527, 7
    %v529 = vsub.s32 %v526, %v528
    %v530 = vrot.slane %v508, %v529
    %v532 = vunpack.c.l.s4 1966171168
    %v533 = vunpack.c.0.s8 %v532
    %v534 = vlaneseq
    %v535 = vshrl.u32 %v534, 7
    %v536 = vsub.s32 %v533, %v535
    %v537 = vrot.slane %v509, %v536
    %v538 = vcombine.high %v516, %v516
    %v539 = vcombine.high %v523, %v523
    %v540 = vcombine.high %v530, %v530
    %v541 = vcombine.high %v537, %v537
    %v542 = vlaneseq
    %v543 = vshrl.u32 %v542, 7
    %v544 = vsub.s32 0, %v543
    %v545 = vrot.slane %v516, %v544
    %v546 = vlaneseq
    %v547 = vshrl.u32 %v546, 7
    %v548 = vsub.s32 0, %v547
    %v549 = vrot.slane %v530, %v548
    %v550 = vlaneseq
    %v551 = vshrl.u32 %v550, 7
    %v552 = vsub.s32 0, %v551
    %v553 = vrot.slane %v538, %v552
    %v554 = vlaneseq
    %v555 = vshrl.u32 %v554, 7
    %v556 = vsub.s32 0, %v555
    %v557 = vrot.slane %v540, %v556
    %v558 = vlaneseq
    %v559 = vshrl.u32 %v558, 7
    %v560 = vsub.s32 0, %v559
    %v561 = vrot.slane %v523, %v560
    %v562 = vlaneseq
    %v563 = vshrl.u32 %v562, 7
    %v564 = vsub.s32 0, %v563
    %v565 = vrot.slane %v537, %v564
    %v566 = vlaneseq
    %v567 = vshrl.u32 %v566, 7
    %v568 = vsub.s32 0, %v567
    %v569 = vrot.slane %v539, %v568
    %v570 = vlaneseq
    %v571 = vshrl.u32 %v570, 7
    %v572 = vsub.s32 0, %v571
    %v573 = vrot.slane %v541, %v572
    %v582 = vmul.f32 %v359, %v545
    %v583 = vmul.f32 %v360, %v549
    %v584 = vmul.f32 %v361, %v553
    %v585 = vmul.f32 %v362, %v557
    %v586 = vmul.f32 %v363, %v561
    %v587 = vmul.f32 %v364, %v565
    %v588 = vmul.f32 %v365, %v569
    %v589 = vmul.f32 %v366, %v573
    %590 = vadd.xlane.f32.xlu0 %v582
    %v591 = vpop.xlane.xlu0 %590
    %592 = vadd.xlane.f32.xlu0 %v583
    %v593 = vpop.xlane.xlu0 %592
    %594 = vadd.xlane.f32.xlu0 %v584
    %v595 = vpop.xlane.xlu0 %594
    %596 = vadd.xlane.f32.xlu0 %v585
    %v597 = vpop.xlane.xlu0 %596
    %598 = vadd.xlane.f32.xlu0 %v586
    %v599 = vpop.xlane.xlu0 %598
    %600 = vadd.xlane.f32.xlu0 %v587
    %v601 = vpop.xlane.xlu0 %600
    %602 = vadd.xlane.f32.xlu0 %v588
    %v603 = vpop.xlane.xlu0 %602
    %604 = vadd.xlane.f32.xlu0 %v589
    %v605 = vpop.xlane.xlu0 %604
    %v614 = vlaneseq
    %v615 = vand.u32 %v614, 127
    %v616 = vlaneseq
    %v617 = vshrl.u32 %v616, 7
    %v618 = vsub.s32 %v615, %v617
    %v619 = vrot.slane %v591, %v618
    %v620 = vlaneseq
    %v621 = vshrl.u32 %v620, 7
    %v622 = vsub.s32 %v615, %v621
    %v623 = vrot.slane %v593, %v622
    %v624 = vlaneseq
    %v625 = vshrl.u32 %v624, 7
    %v626 = vsub.s32 %v615, %v625
    %v627 = vrot.slane %v595, %v626
    %v628 = vlaneseq
    %v629 = vshrl.u32 %v628, 7
    %v630 = vsub.s32 %v615, %v629
    %v631 = vrot.slane %v597, %v630
    %v632 = vlaneseq
    %v633 = vshrl.u32 %v632, 7
    %v634 = vsub.s32 %v615, %v633
    %v635 = vrot.slane %v599, %v634
    %v636 = vlaneseq
    %v637 = vshrl.u32 %v636, 7
    %v638 = vsub.s32 %v615, %v637
    %v639 = vrot.slane %v601, %v638
    %v640 = vlaneseq
    %v641 = vshrl.u32 %v640, 7
    %v642 = vsub.s32 %v615, %v641
    %v643 = vrot.slane %v603, %v642
    %v644 = vlaneseq
    %v645 = vshrl.u32 %v644, 7
    %v646 = vsub.s32 %v615, %v645
    %v647 = vrot.slane %v605, %v646
    %vm648 = vcmask 1041409
    %v649 = vsel %vm648, %v623, %v619
    %vm650 = vcmask 1042434
    %v651 = vsel %vm650, %v627, %v649
    %vm652 = vcmask 1043459
    %v653 = vsel %vm652, %v631, %v651
    %vm654 = vcmask 1044484
    %v655 = vsel %vm654, %v635, %v653
    %vm656 = vcmask 1045509
    %v657 = vsel %vm656, %v639, %v655
    %vm658 = vcmask 1046534
    %v659 = vsel %vm658, %v643, %v657
    %vm660 = vcmask 1047559
    %v661 = vsel %vm660, %v647, %v659
    %vm663 = vcmask 64512
    %v664 = vsel %vm663, %v661, -inf
    %665 = vmax.xlane.f32.xlu0 %v664
    %v666 = vpop.xlane.xlu0 %665
    %v668 = vlaneseq
    %v669 = vshrl.u32 %v668, 7
    %v670 = vsub.s32 0, %v669
    %v671 = vrot.slane %v666, %v670
    %v672 = vlaneseq
    %v673 = vshrl.u32 %v672, 7
    %v674 = vsub.s32 1, %v673
    %v675 = vrot.slane %v666, %v674
    %v676 = vlaneseq
    %v677 = vshrl.u32 %v676, 7
    %v678 = vsub.s32 2, %v677
    %v679 = vrot.slane %v666, %v678
    %v680 = vlaneseq
    %v681 = vshrl.u32 %v680, 7
    %v682 = vsub.s32 3, %v681
    %v683 = vrot.slane %v666, %v682
    %v684 = vlaneseq
    %v685 = vshrl.u32 %v684, 7
    %v686 = vsub.s32 4, %v685
    %v687 = vrot.slane %v666, %v686
    %v688 = vlaneseq
    %v689 = vshrl.u32 %v688, 7
    %v690 = vsub.s32 5, %v689
    %v691 = vrot.slane %v666, %v690
    %v692 = vlaneseq
    %v693 = vshrl.u32 %v692, 7
    %v694 = vsub.s32 6, %v693
    %v695 = vrot.slane %v666, %v694
    %v696 = vlaneseq
    %v697 = vshrl.u32 %v696, 7
    %v698 = vsub.s32 7, %v697
    %v699 = vrot.slane %v666, %v698
    %v708 = vsub.f32 %v591, %v671
    %v709 = vsub.f32 %v593, %v675
    %v710 = vsub.f32 %v595, %v679
    %v711 = vsub.f32 %v597, %v683
    %v712 = vsub.f32 %v599, %v687
    %v713 = vsub.f32 %v601, %v691
    %v714 = vsub.f32 %v603, %v695
    %v715 = vsub.f32 %v605, %v699
    %v716 = vmul.f32 %v708, 1.442695
    %v717 = vpow.pop %v716
    %v718 = vmul.f32 %v709, 1.442695
    %v719 = vpow.pop %v718
    %v720 = vmul.f32 %v710, 1.442695
    %v721 = vpow.pop %v720
    %v722 = vmul.f32 %v711, 1.442695
    %v723 = vpow.pop %v722
    %v724 = vmul.f32 %v712, 1.442695
    %v725 = vpow.pop %v724
    %v726 = vmul.f32 %v713, 1.442695
    %v727 = vpow.pop %v726
    %v728 = vmul.f32 %v714, 1.442695
    %v729 = vpow.pop %v728
    %v730 = vmul.f32 %v715, 1.442695
    %v731 = vpow.pop %v730
    %740 = vset.pattern.permute.xlu0 0
    %741 = vperm.xlu0 %740, %v717
    %v742 = vpop.permute.xlu0 %741
    %743 = vset.pattern.permute.xlu0 0
    %744 = vperm.xlu0 %743, %v719
    %v745 = vpop.permute.xlu0 %744
    %746 = vset.pattern.permute.xlu0 0
    %747 = vperm.xlu0 %746, %v721
    %v748 = vpop.permute.xlu0 %747
    %749 = vset.pattern.permute.xlu0 0
    %750 = vperm.xlu0 %749, %v723
    %v751 = vpop.permute.xlu0 %750
    %752 = vset.pattern.permute.xlu0 0
    %753 = vperm.xlu0 %752, %v725
    %v754 = vpop.permute.xlu0 %753
    %755 = vset.pattern.permute.xlu0 0
    %756 = vperm.xlu0 %755, %v727
    %v757 = vpop.permute.xlu0 %756
    %758 = vset.pattern.permute.xlu0 0
    %759 = vperm.xlu0 %758, %v729
    %v760 = vpop.permute.xlu0 %759
    %761 = vset.pattern.permute.xlu0 0
    %762 = vperm.xlu0 %761, %v731
    %v763 = vpop.permute.xlu0 %762
    %v764 = vlaneseq
    %v765 = vshrl.u32 %v764, 7
    %v766 = vsub.s32 %v615, %v765
    %v767 = vrot.slane %v742, %v766
    %v768 = vlaneseq
    %v769 = vshrl.u32 %v768, 7
    %v770 = vsub.s32 %v615, %v769
    %v771 = vrot.slane %v745, %v770
    %v772 = vlaneseq
    %v773 = vshrl.u32 %v772, 7
    %v774 = vsub.s32 %v615, %v773
    %v775 = vrot.slane %v748, %v774
    %v776 = vlaneseq
    %v777 = vshrl.u32 %v776, 7
    %v778 = vsub.s32 %v615, %v777
    %v779 = vrot.slane %v751, %v778
    %v780 = vlaneseq
    %v781 = vshrl.u32 %v780, 7
    %v782 = vsub.s32 %v615, %v781
    %v783 = vrot.slane %v754, %v782
    %v784 = vlaneseq
    %v785 = vshrl.u32 %v784, 7
    %v786 = vsub.s32 %v615, %v785
    %v787 = vrot.slane %v757, %v786
    %v788 = vlaneseq
    %v789 = vshrl.u32 %v788, 7
    %v790 = vsub.s32 %v615, %v789
    %v791 = vrot.slane %v760, %v790
    %v792 = vlaneseq
    %v793 = vshrl.u32 %v792, 7
    %v794 = vsub.s32 %v615, %v793
    %v795 = vrot.slane %v763, %v794
    %v796 = vsel %vm648, %v771, %v767
    %v797 = vsel %vm650, %v775, %v796
    %v798 = vsel %vm652, %v779, %v797
    %v799 = vsel %vm654, %v783, %v798
    %v800 = vsel %vm656, %v787, %v799
    %v801 = vsel %vm658, %v791, %v800
    %v802 = vsel %vm660, %v795, %v801
    %v804 = vsel %vm663, %v802, 0.0
    %805 = vadd.xlane.f32.xlu0 %v804
    %v806 = vpop.xlane.xlu0 %805
    %v807 = vrcp.pop %v806
    %v809 = vlaneseq
    %v810 = vshrl.u32 %v809, 7
    %v811 = vsub.s32 0, %v810
    %v812 = vrot.slane %v807, %v811
    %v813 = vlaneseq
    %v814 = vshrl.u32 %v813, 7
    %v815 = vsub.s32 1, %v814
    %v816 = vrot.slane %v807, %v815
    %v817 = vlaneseq
    %v818 = vshrl.u32 %v817, 7
    %v819 = vsub.s32 2, %v818
    %v820 = vrot.slane %v807, %v819
    %v821 = vlaneseq
    %v822 = vshrl.u32 %v821, 7
    %v823 = vsub.s32 3, %v822
    %v824 = vrot.slane %v807, %v823
    %v825 = vlaneseq
    %v826 = vshrl.u32 %v825, 7
    %v827 = vsub.s32 4, %v826
    %v828 = vrot.slane %v807, %v827
    %v829 = vlaneseq
    %v830 = vshrl.u32 %v829, 7
    %v831 = vsub.s32 5, %v830
    %v832 = vrot.slane %v807, %v831
    %v833 = vlaneseq
    %v834 = vshrl.u32 %v833, 7
    %v835 = vsub.s32 6, %v834
    %v836 = vrot.slane %v807, %v835
    %v837 = vlaneseq
    %v838 = vshrl.u32 %v837, 7
    %v839 = vsub.s32 7, %v838
    %v840 = vrot.slane %v807, %v839
    %v849 = vmul.f32 %v717, %v812
    %v850 = vmul.f32 %v719, %v816
    %v851 = vmul.f32 %v721, %v820
    %v852 = vmul.f32 %v723, %v824
    %v853 = vmul.f32 %v725, %v828
    %v854 = vmul.f32 %v727, %v832
    %v855 = vmul.f32 %v729, %v836
    %v856 = vmul.f32 %v731, %v840
    %858 = vset.pattern.permute.xlu0 0
    %859 = vperm.xlu0 %858, %v849
    %v860 = vpop.permute.xlu0 %859
    %863 = vset.pattern.permute.xlu0 0
    %864 = vperm.xlu0 %863, %v850
    %v865 = vpop.permute.xlu0 %864
    %868 = vset.pattern.permute.xlu0 0
    %869 = vperm.xlu0 %868, %v851
    %v870 = vpop.permute.xlu0 %869
    %873 = vset.pattern.permute.xlu0 0
    %874 = vperm.xlu0 %873, %v852
    %v875 = vpop.permute.xlu0 %874
    %878 = vset.pattern.permute.xlu0 0
    %879 = vperm.xlu0 %878, %v853
    %v880 = vpop.permute.xlu0 %879
    %883 = vset.pattern.permute.xlu0 0
    %884 = vperm.xlu0 %883, %v854
    %v885 = vpop.permute.xlu0 %884
    %888 = vset.pattern.permute.xlu0 0
    %889 = vperm.xlu0 %888, %v855
    %v890 = vpop.permute.xlu0 %889
    %893 = vset.pattern.permute.xlu0 0
    %894 = vperm.xlu0 %893, %v856
    %v895 = vpop.permute.xlu0 %894
    %v897 = vmul.f32 %v860, %v128
    %v898 = vmul.f32 %v865, %v129
    %v899 = vmul.f32 %v870, %v130
    %v900 = vmul.f32 %v875, %v131
    %v901 = vmul.f32 %v880, %v132
    %v902 = vmul.f32 %v885, %v133
    %v903 = vmul.f32 %v890, %v134
    %v904 = vmul.f32 %v895, %v135
    %v905 = vrot.slane %v897, 4
    %v906 = vadd.f32 %v897, %v905
    %v907 = vrot.slane %v906, 2
    %v908 = vadd.f32 %v906, %v907
    %v909 = vrot.slane %v908, 1
    %v910 = vadd.f32 %v908, %v909
    %v911 = vrot.slane %v898, 4
    %v912 = vadd.f32 %v898, %v911
    %v913 = vrot.slane %v912, 2
    %v914 = vadd.f32 %v912, %v913
    %v915 = vrot.slane %v914, 1
    %v916 = vadd.f32 %v914, %v915
    %v917 = vrot.slane %v899, 4
    %v918 = vadd.f32 %v899, %v917
    %v919 = vrot.slane %v918, 2
    %v920 = vadd.f32 %v918, %v919
    %v921 = vrot.slane %v920, 1
    %v922 = vadd.f32 %v920, %v921
    %v923 = vrot.slane %v900, 4
    %v924 = vadd.f32 %v900, %v923
    %v925 = vrot.slane %v924, 2
    %v926 = vadd.f32 %v924, %v925
    %v927 = vrot.slane %v926, 1
    %v928 = vadd.f32 %v926, %v927
    %v929 = vrot.slane %v901, 4
    %v930 = vadd.f32 %v901, %v929
    %v931 = vrot.slane %v930, 2
    %v932 = vadd.f32 %v930, %v931
    %v933 = vrot.slane %v932, 1
    %v934 = vadd.f32 %v932, %v933
    %v935 = vrot.slane %v902, 4
    %v936 = vadd.f32 %v902, %v935
    %v937 = vrot.slane %v936, 2
    %v938 = vadd.f32 %v936, %v937
    %v939 = vrot.slane %v938, 1
    %v940 = vadd.f32 %v938, %v939
    %v941 = vrot.slane %v903, 4
    %v942 = vadd.f32 %v903, %v941
    %v943 = vrot.slane %v942, 2
    %v944 = vadd.f32 %v942, %v943
    %v945 = vrot.slane %v944, 1
    %v946 = vadd.f32 %v944, %v945
    %v947 = vrot.slane %v904, 4
    %v948 = vadd.f32 %v904, %v947
    %v949 = vrot.slane %v948, 2
    %v950 = vadd.f32 %v948, %v949
    %v951 = vrot.slane %v950, 1
    %v952 = vadd.f32 %v950, %v951
    %v953 = vld [vmem:[#allocation10] sm:$0xff]
    %v954 = vld [vmem:[#allocation10 + $0x8] sm:$0xff]
    %v955 = vld [vmem:[#allocation10 + $0x10] sm:$0xff]
    %v956 = vld [vmem:[#allocation10 + $0x18] sm:$0xff]
    %v957 = vld [vmem:[#allocation10 + $0x20] sm:$0xff]
    %v958 = vld [vmem:[#allocation10 + $0x28] sm:$0xff]
    %v959 = vld [vmem:[#allocation10 + $0x30] sm:$0xff]
    %v960 = vld [vmem:[#allocation10 + $0x38] sm:$0xff]
    %v961 = vld [vmem:[#allocation10 + $0x40] sm:$0xff]
    %v962 = vld [vmem:[#allocation10 + $0x48] sm:$0xff]
    %v963 = vld [vmem:[#allocation10 + $0x50] sm:$0xff]
    %v964 = vld [vmem:[#allocation10 + $0x58] sm:$0xff]
    %v965 = vld [vmem:[#allocation10 + $0x60] sm:$0xff]
    %v966 = vld [vmem:[#allocation10 + $0x68] sm:$0xff]
    %v967 = vld [vmem:[#allocation10 + $0x70] sm:$0xff]
    %v968 = vld [vmem:[#allocation10 + $0x78] sm:$0xff]
    %v969 = vld [vmem:[%s8 + $0x4] sm:$0x1]
    %v971 = vlaneseq
    %v972 = vshrl.u32 %v971, 7
    %v973 = vsub.s32 0, %v972
    %v974 = vrot.slane %v969, %v973
    %v984 = vsel %vm648, %v916, %v910
    %v985 = vsel %vm650, %v922, %v984
    %v986 = vsel %vm652, %v928, %v985
    %v987 = vsel %vm654, %v934, %v986
    %v988 = vsel %vm656, %v940, %v987
    %v989 = vsel %vm658, %v946, %v988
    %v990 = vsel %vm660, %v952, %v989
    %992 = vmatprep.subr.mxu0 0.0
    %993 = vmatpush1.msra.mxu0 %v968
    %994 = vmatprep.subr.mxu0 0.0
    %995 = vmatpush1.msra.mxu0 %v967
    %996 = vmatprep.subr.mxu0 0.0
    %997 = vmatpush1.msra.mxu0 %v966
    %998 = vmatprep.subr.mxu0 0.0
    %999 = vmatpush1.msra.mxu0 %v965
    %1000 = vmatprep.subr.mxu0 0.0
    %1001 = vmatpush1.msra.mxu0 %v964
    %1002 = vmatprep.subr.mxu0 0.0
    %1003 = vmatpush1.msra.mxu0 %v963
    %1004 = vmatprep.subr.mxu0 0.0
    %1005 = vmatpush1.msra.mxu0 %v962
    %1006 = vmatprep.subr.mxu0 0.0
    %1007 = vmatpush1.msra.mxu0 %v961
    %1008 = vmatprep.subr.mxu0 0.0
    %1009 = vmatpush1.msra.mxu0 %v960
    %1010 = vmatprep.subr.mxu0 0.0
    %1011 = vmatpush1.msra.mxu0 %v959
    %1012 = vmatprep.subr.mxu0 0.0
    %1013 = vmatpush1.msra.mxu0 %v958
    %1014 = vmatprep.subr.mxu0 0.0
    %1015 = vmatpush1.msra.mxu0 %v957
    %1016 = vmatprep.subr.mxu0 0.0
    %1017 = vmatpush1.msra.mxu0 %v956
    %1018 = vmatprep.subr.mxu0 0.0
    %1019 = vmatpush1.msra.mxu0 %v955
    %1020 = vmatprep.subr.mxu0 0.0
    %1021 = vmatpush1.msra.mxu0 %v954
    %1022 = vmatprep.subr.mxu0 0.0
    %1023 = vmatpush1.msra.mxu0 %v953
    %1024 = vmatprep.subr.mxu0 0.0
    %1025 = vmatpush2.msra.mxu0 0.0
    %1026 = vmatprep.subr.mxu0 0.0
    %1027 = vmatpush2.msra.mxu0 0.0
    %1028 = vmatprep.subr.mxu0 0.0
    %1029 = vmatpush2.msra.mxu0 0.0
    %1030 = vmatprep.subr.mxu0 0.0
    %1031 = vmatpush2.msra.mxu0 0.0
    %1032 = vmatprep.subr.mxu0 0.0
    %1033 = vmatpush2.msra.mxu0 0.0
    %1034 = vmatprep.subr.mxu0 0.0
    %1035 = vmatpush2.msra.mxu0 0.0
    %1036 = vmatprep.subr.mxu0 0.0
    %1037 = vmatpush2.msra.mxu0 0.0
    %1038 = vmatprep.subr.mxu0 0.0
    %1039 = vmatpush2.msra.mxu0 0.0
    %1040 = vmatprep.subr.mxu0 0.0
    %1041 = vmatpush2.msra.mxu0 0.0
    %1042 = vmatprep.subr.mxu0 0.0
    %1043 = vmatpush2.msra.mxu0 0.0
    %1044 = vmatprep.subr.mxu0 0.0
    %1045 = vmatpush2.msra.mxu0 0.0
    %1046 = vmatprep.subr.mxu0 0.0
    %1047 = vmatpush2.msra.mxu0 0.0
    %1048 = vmatprep.subr.mxu0 0.0
    %1049 = vmatpush2.msra.mxu0 0.0
    %1050 = vmatprep.subr.mxu0 0.0
    %1051 = vmatpush2.msra.mxu0 0.0
    %1052 = vmatprep.subr.mxu0 0.0
    %1053 = vmatpush2.msra.mxu0 0.0
    %1054 = vmatprep.subr.mxu0 0.0
    %1055 = vmatpush2.msra.mxu0 0.0
    %1056 = vmatprep.mubr.f32.mxu0 0.0
    %1057 = vmatmul.mubr.f32.gmra.mxu0 %v990
    %v1058 = vpop.f32.mrf.mxu0
    %v1059 = vadd.f32 %v974, %v1058
    %v1060 = vpop.f32.mrf.mxu0
    %1061 = vdwg.mxu0
    %v1062 = vmax.f32 %v1059, 0.0
    %v1063 = vmul.f32 %v483, %v1062
    %v1064 = vrsqrt.pop %v1063
    %v1065 = vmul.f32 %v1063, %v1064
    %vm1066 = vcmp.eq.f32.partialorder %v1063, inf
    %v1067 = vsel %vm1066, %v1063, %v1065
    %vm1068 = vcmp.eq.f32.partialorder %v1063, 0.0
    %v1069 = vand.u32 %v1063, 2147483648
    %v1070 = vsel %vm1068, %v1069, %v1067
    %1071 = vadd.xlane.f32.xlu0 %v1063
    %v1072 = vpop.xlane.xlu0 %1071
    %v1073 = vrsqrt.pop %v1072
    %v1074 = vmul.f32 %v1072, %v1073
    %vm1075 = vcmp.eq.f32.partialorder %v1072, inf
    %v1076 = vsel %vm1075, %v1072, %v1074
    %vm1077 = vcmp.eq.f32.partialorder %v1072, 0.0
    %v1078 = vand.u32 %v1072, 2147483648
    %v1079 = vsel %vm1077, %v1078, %v1076
    %v1080 = vmax.f32 %v1079, 1e-12
    %v1081 = vrcp.pop %v1080
    %v1082 = vmul.f32 %v1070, %v1081
    %v1083 = vld [vmem:[#allocation11] sm:$0xff]
    %v1084 = vld [vmem:[#allocation11 + $0x8] sm:$0xff]
    %v1085 = vld [vmem:[#allocation11 + $0x10] sm:$0xff]
    %v1086 = vld [vmem:[#allocation11 + $0x18] sm:$0xff]
    %v1087 = vld [vmem:[#allocation11 + $0x20] sm:$0xff]
    %v1088 = vld [vmem:[#allocation11 + $0x28] sm:$0xff]
    %v1089 = vld [vmem:[#allocation11 + $0x30] sm:$0xff]
    %v1090 = vld [vmem:[#allocation11 + $0x38] sm:$0xff]
    %v1091 = vld [vmem:[#allocation11 + $0x40] sm:$0xff]
    %v1092 = vld [vmem:[#allocation11 + $0x48] sm:$0xff]
    %v1093 = vld [vmem:[#allocation11 + $0x50] sm:$0xff]
    %v1094 = vld [vmem:[#allocation11 + $0x58] sm:$0xff]
    %v1095 = vld [vmem:[#allocation11 + $0x60] sm:$0xff]
    %v1096 = vld [vmem:[#allocation11 + $0x68] sm:$0xff]
    %v1097 = vld [vmem:[#allocation11 + $0x70] sm:$0xff]
    %v1098 = vld [vmem:[#allocation11 + $0x78] sm:$0xff]
    %v1099 = vld [vmem:[#allocation11 + $0x80] sm:$0xff]
    %v1100 = vld [vmem:[#allocation11 + $0x88] sm:$0xff]
    %v1101 = vld [vmem:[#allocation11 + $0x90] sm:$0xff]
    %v1102 = vld [vmem:[#allocation11 + $0x98] sm:$0xff]
    %v1103 = vld [vmem:[#allocation11 + $0xa0] sm:$0xff]
    %v1104 = vld [vmem:[#allocation11 + $0xa8] sm:$0xff]
    %v1105 = vld [vmem:[#allocation11 + $0xb0] sm:$0xff]
    %v1106 = vld [vmem:[#allocation11 + $0xb8] sm:$0xff]
    %v1107 = vld [vmem:[#allocation11 + $0xc0] sm:$0xff]
    %v1108 = vld [vmem:[#allocation11 + $0xc8] sm:$0xff]
    %v1109 = vld [vmem:[#allocation11 + $0xd0] sm:$0xff]
    %v1110 = vld [vmem:[#allocation11 + $0xd8] sm:$0xff]
    %v1111 = vld [vmem:[#allocation11 + $0xe0] sm:$0xff]
    %v1112 = vld [vmem:[#allocation11 + $0xe8] sm:$0xff]
    %v1113 = vld [vmem:[#allocation11 + $0xf0] sm:$0xff]
    %v1114 = vld [vmem:[#allocation11 + $0xf8] sm:$0xff]
    %v1115 = vld [vmem:[%s8 + $0x5] sm:$0x3]
    %v1117 = vlaneseq
    %v1118 = vshrl.u32 %v1117, 7
    %v1119 = vsub.s32 0, %v1118
    %v1120 = vrot.slane %v1115, %v1119
    %v1121 = vlaneseq
    %v1122 = vshrl.u32 %v1121, 7
    %v1123 = vsub.s32 1, %v1122
    %v1124 = vrot.slane %v1115, %v1123
    %1127 = vmatprep.subr.mxu0 %v1114
    %1128 = vmatpush1.msra.mxu0 %v1113
    %1129 = vmatprep.subr.mxu0 %v1112
    %1130 = vmatpush1.msra.mxu0 %v1111
    %1131 = vmatprep.subr.mxu0 %v1110
    %1132 = vmatpush1.msra.mxu0 %v1109
    %1133 = vmatprep.subr.mxu0 %v1108
    %1134 = vmatpush1.msra.mxu0 %v1107
    %1135 = vmatprep.subr.mxu0 %v1106
    %1136 = vmatpush1.msra.mxu0 %v1105
    %1137 = vmatprep.subr.mxu0 %v1104
    %1138 = vmatpush1.msra.mxu0 %v1103
    %1139 = vmatprep.subr.mxu0 %v1102
    %1140 = vmatpush1.msra.mxu0 %v1101
    %1141 = vmatprep.subr.mxu0 %v1100
    %1142 = vmatpush1.msra.mxu0 %v1099
    %1143 = vmatprep.subr.mxu0 %v1098
    %1144 = vmatpush1.msra.mxu0 %v1097
    %1145 = vmatprep.subr.mxu0 %v1096
    %1146 = vmatpush1.msra.mxu0 %v1095
    %1147 = vmatprep.subr.mxu0 %v1094
    %1148 = vmatpush1.msra.mxu0 %v1093
    %1149 = vmatprep.subr.mxu0 %v1092
    %1150 = vmatpush1.msra.mxu0 %v1091
    %1151 = vmatprep.subr.mxu0 %v1090
    %1152 = vmatpush1.msra.mxu0 %v1089
    %1153 = vmatprep.subr.mxu0 %v1088
    %1154 = vmatpush1.msra.mxu0 %v1087
    %1155 = vmatprep.subr.mxu0 %v1086
    %1156 = vmatpush1.msra.mxu0 %v1085
    %1157 = vmatprep.subr.mxu0 %v1084
    %1158 = vmatpush1.msra.mxu0 %v1083
    %1159 = vmatprep.subr.mxu0 0.0
    %1160 = vmatpush2.msra.mxu0 0.0
    %1161 = vmatprep.subr.mxu0 0.0
    %1162 = vmatpush2.msra.mxu0 0.0
    %1163 = vmatprep.subr.mxu0 0.0
    %1164 = vmatpush2.msra.mxu0 0.0
    %1165 = vmatprep.subr.mxu0 0.0
    %1166 = vmatpush2.msra.mxu0 0.0
    %1167 = vmatprep.subr.mxu0 0.0
    %1168 = vmatpush2.msra.mxu0 0.0
    %1169 = vmatprep.subr.mxu0 0.0
    %1170 = vmatpush2.msra.mxu0 0.0
    %1171 = vmatprep.subr.mxu0 0.0
    %1172 = vmatpush2.msra.mxu0 0.0
    %1173 = vmatprep.subr.mxu0 0.0
    %1174 = vmatpush2.msra.mxu0 0.0
    %1175 = vmatprep.subr.mxu0 0.0
    %1176 = vmatpush2.msra.mxu0 0.0
    %1177 = vmatprep.subr.mxu0 0.0
    %1178 = vmatpush2.msra.mxu0 0.0
    %1179 = vmatprep.subr.mxu0 0.0
    %1180 = vmatpush2.msra.mxu0 0.0
    %1181 = vmatprep.subr.mxu0 0.0
    %1182 = vmatpush2.msra.mxu0 0.0
    %1183 = vmatprep.subr.mxu0 0.0
    %1184 = vmatpush2.msra.mxu0 0.0
    %1185 = vmatprep.subr.mxu0 0.0
    %1186 = vmatpush2.msra.mxu0 0.0
    %1187 = vmatprep.subr.mxu0 0.0
    %1188 = vmatpush2.msra.mxu0 0.0
    %1189 = vmatprep.subr.mxu0 0.0
    %1190 = vmatpush2.msra.mxu0 0.0
    %1191 = vmatprep.mubr.f32.mxu0 0.0
    %1192 = vmatmul.mubr.f32.gmra.mxu0 %v1082
    %v1193 = vpop.f32.mrf.mxu0
    %v1194 = vadd.f32 %v1120, %v1193
    %v1195 = vpop.f32.mrf.mxu0
    %v1196 = vadd.f32 %v1124, %v1195
    %1197 = vdwg.mxu0
    %v1198 = vmax.f32 %v1194, 0.0
    %v1199 = vmax.f32 %v1196, 0.0
    %v1200 = vld [vmem:[#allocation13] sm:$0xff]
    %v1201 = vld [vmem:[#allocation13 + $0x8] sm:$0xff]
    %v1202 = vld [vmem:[#allocation13 + $0x10] sm:$0xff]
    %v1203 = vld [vmem:[#allocation13 + $0x18] sm:$0xff]
    %v1204 = vld [vmem:[#allocation13 + $0x20] sm:$0xff]
    %v1205 = vld [vmem:[#allocation13 + $0x28] sm:$0xff]
    %v1206 = vld [vmem:[#allocation13 + $0x30] sm:$0xff]
    %v1207 = vld [vmem:[#allocation13 + $0x38] sm:$0xff]
    %v1208 = vld [vmem:[#allocation13 + $0x40] sm:$0xff]
    %v1209 = vld [vmem:[#allocation13 + $0x48] sm:$0xff]
    %v1210 = vld [vmem:[#allocation13 + $0x50] sm:$0xff]
    %v1211 = vld [vmem:[#allocation13 + $0x58] sm:$0xff]
    %v1212 = vld [vmem:[#allocation13 + $0x60] sm:$0xff]
    %v1213 = vld [vmem:[#allocation13 + $0x68] sm:$0xff]
    %v1214 = vld [vmem:[#allocation13 + $0x70] sm:$0xff]
    %v1215 = vld [vmem:[#allocation13 + $0x78] sm:$0xff]
    %v1216 = vld [vmem:[#allocation13 + $0x80] sm:$0xff]
    %v1217 = vld [vmem:[#allocation13 + $0x88] sm:$0xff]
    %v1218 = vld [vmem:[#allocation13 + $0x90] sm:$0xff]
    %v1219 = vld [vmem:[#allocation13 + $0x98] sm:$0xff]
    %v1220 = vld [vmem:[#allocation13 + $0xa0] sm:$0xff]
    %v1221 = vld [vmem:[#allocation13 + $0xa8] sm:$0xff]
    %v1222 = vld [vmem:[#allocation13 + $0xb0] sm:$0xff]
    %v1223 = vld [vmem:[#allocation13 + $0xb8] sm:$0xff]
    %v1224 = vld [vmem:[#allocation13 + $0xc0] sm:$0xff]
    %v1225 = vld [vmem:[#allocation13 + $0xc8] sm:$0xff]
    %v1226 = vld [vmem:[#allocation13 + $0xd0] sm:$0xff]
    %v1227 = vld [vmem:[#allocation13 + $0xd8] sm:$0xff]
    %v1228 = vld [vmem:[#allocation13 + $0xe0] sm:$0xff]
    %v1229 = vld [vmem:[#allocation13 + $0xe8] sm:$0xff]
    %v1230 = vld [vmem:[#allocation13 + $0xf0] sm:$0xff]
    %v1231 = vld [vmem:[#allocation13 + $0xf8] sm:$0xff]
    %v1232 = vld [vmem:[%s8 + $0x7] sm:$0x1]
    %v1234 = vlaneseq
    %v1235 = vshrl.u32 %v1234, 7
    %v1236 = vsub.s32 0, %v1235
    %v1237 = vrot.slane %v1232, %v1236
    %1239 = vmatprep.subr.mxu0 0.0
    %1240 = vmatpush1.msra.mxu0 %v1215
    %1241 = vmatprep.subr.mxu0 0.0
    %1242 = vmatpush1.msra.mxu0 %v1214
    %1243 = vmatprep.subr.mxu0 0.0
    %1244 = vmatpush1.msra.mxu0 %v1213
    %1245 = vmatprep.subr.mxu0 0.0
    %1246 = vmatpush1.msra.mxu0 %v1212
    %1247 = vmatprep.subr.mxu0 0.0
    %1248 = vmatpush1.msra.mxu0 %v1211
    %1249 = vmatprep.subr.mxu0 0.0
    %1250 = vmatpush1.msra.mxu0 %v1210
    %1251 = vmatprep.subr.mxu0 0.0
    %1252 = vmatpush1.msra.mxu0 %v1209
    %1253 = vmatprep.subr.mxu0 0.0
    %1254 = vmatpush1.msra.mxu0 %v1208
    %1255 = vmatprep.subr.mxu0 0.0
    %1256 = vmatpush1.msra.mxu0 %v1207
    %1257 = vmatprep.subr.mxu0 0.0
    %1258 = vmatpush1.msra.mxu0 %v1206
    %1259 = vmatprep.subr.mxu0 0.0
    %1260 = vmatpush1.msra.mxu0 %v1205
    %1261 = vmatprep.subr.mxu0 0.0
    %1262 = vmatpush1.msra.mxu0 %v1204
    %1263 = vmatprep.subr.mxu0 0.0
    %1264 = vmatpush1.msra.mxu0 %v1203
    %1265 = vmatprep.subr.mxu0 0.0
    %1266 = vmatpush1.msra.mxu0 %v1202
    %1267 = vmatprep.subr.mxu0 0.0
    %1268 = vmatpush1.msra.mxu0 %v1201
    %1269 = vmatprep.subr.mxu0 0.0
    %1270 = vmatpush1.msra.mxu0 %v1200
    %1271 = vmatprep.subr.mxu0 0.0
    %1272 = vmatpush2.msra.mxu0 %v1231
    %1273 = vmatprep.subr.mxu0 0.0
    %1274 = vmatpush2.msra.mxu0 %v1230
    %1275 = vmatprep.subr.mxu0 0.0
    %1276 = vmatpush2.msra.mxu0 %v1229
    %1277 = vmatprep.subr.mxu0 0.0
    %1278 = vmatpush2.msra.mxu0 %v1228
    %1279 = vmatprep.subr.mxu0 0.0
    %1280 = vmatpush2.msra.mxu0 %v1227
    %1281 = vmatprep.subr.mxu0 0.0
    %1282 = vmatpush2.msra.mxu0 %v1226
    %1283 = vmatprep.subr.mxu0 0.0
    %1284 = vmatpush2.msra.mxu0 %v1225
    %1285 = vmatprep.subr.mxu0 0.0
    %1286 = vmatpush2.msra.mxu0 %v1224
    %1287 = vmatprep.subr.mxu0 0.0
    %1288 = vmatpush2.msra.mxu0 %v1223
    %1289 = vmatprep.subr.mxu0 0.0
    %1290 = vmatpush2.msra.mxu0 %v1222
    %1291 = vmatprep.subr.mxu0 0.0
    %1292 = vmatpush2.msra.mxu0 %v1221
    %1293 = vmatprep.subr.mxu0 0.0
    %1294 = vmatpush2.msra.mxu0 %v1220
    %1295 = vmatprep.subr.mxu0 0.0
    %1296 = vmatpush2.msra.mxu0 %v1219
    %1297 = vmatprep.subr.mxu0 0.0
    %1298 = vmatpush2.msra.mxu0 %v1218
    %1299 = vmatprep.subr.mxu0 0.0
    %1300 = vmatpush2.msra.mxu0 %v1217
    %1301 = vmatprep.subr.mxu0 0.0
    %1302 = vmatpush2.msra.mxu0 %v1216
    %1303 = vmatprep.mubr.f32.mxu0 %v1199
    %1304 = vmatmul.mubr.f32.gmra.mxu0 %v1198
    %v1305 = vpop.f32.mrf.mxu0
    %v1306 = vadd.f32 %v1237, %v1305
    %v1307 = vpop.f32.mrf.mxu0
    %1308 = vdwg.mxu0
    %1309 = vst [vmem:[#allocation14] sm:$0xff] %v1306
    // Predicated region
    $region66: #{top_down_baseline.1} parent=1 // pred_check
      _
    $region67: #{top_down_baseline.1} parent=1 // pred_check_branch
      %1311 = sbr.rel (0) target = $region69
    $region68: #{top_down_baseline.1} parent=1 // pred_region
      %s1313 = ssub.s32 128, 128
      %1314 = vsyncadd [#allocation4], %s1313
      %s1316 = sshll.u32 [#allocation14], 4
      %s1317 = int_to_ptr.vmem [resolvable:$true] %s1316
      %1319 = dma.vmem_to_hbm [thread:$0]  %s1317, 128, %s9, [#allocation4]
    $region69: #{top_down_baseline.1} parent=1 // pred_fallthru
      _
    // Predicated region
    $region70: #{top_down_baseline.1} parent=1 // pred_check
      _
    $region71: #{top_down_baseline.1} parent=1 // pred_check_branch
      %1321 = sbr.rel (0) target = $region73
    $region72: #{top_down_baseline.1} parent=1 // pred_region
      %1322 = dma.done [#allocation4], 128
    $region73: #{top_down_baseline.1} parent=1 // pred_fallthru
      _
    %1323 = vsyncpa [#allocation3], 1
    %1324 = vsyncpa [#allocation6], 1
    %1325 = vsyncpa [#allocation9], 1
    %1326 = vsyncpa [#allocation12], 1
    %1327 = vsyncpa [#allocation4], 1

</llo_original>
